<compile_context>
chip_gen: v6e
topology: v6e:2x2x1
jax: 0.10.0
libtpu: 0.0.40
codegen_flags: <defaults>
</compile_context>

<pallas_src>
import math
import functools

import jax
import jax.numpy as jnp
from jax.experimental import pallas as pl
from jax.experimental.pallas import tpu as pltpu

D_MODEL = 32
NUM_HEADS = 4
D_HEAD = D_MODEL // NUM_HEADS
BATCH = 2
SEQ = 8


# --------------------------------------------------------------------------
# Fused kernel: per batch element, do all projections + all heads' attention.
# --------------------------------------------------------------------------
def _mha_kernel(q_ref, k_ref, v_ref,
                wq_ref, bq_ref, wk_ref, bk_ref, wv_ref, bv_ref,
                mask_ref, ctx_ref, attn_ref, *, num_heads, d_head, inv_sqrt_dh):
    # ---- input projections (three (T,D)@(D,D) MXU dots, all in VMEM) ----
    q = jnp.dot(q_ref[0], wq_ref[...], preferred_element_type=jnp.float32) + bq_ref[...]
    k = jnp.dot(k_ref[0], wk_ref[...], preferred_element_type=jnp.float32) + bk_ref[...]
    v = jnp.dot(v_ref[0], wv_ref[...], preferred_element_type=jnp.float32) + bv_ref[...]
    m = mask_ref[0]                        # (1, T) int32, broadcasts over query rows

    # ---- per-head scaled dot-product attention (static unroll, H = 4) ----
    dn = (((1,), (1,)), ((), ()))          # contract d_head of both operands: q @ k^T
    ctx_parts = []
    for h in range(num_heads):
        sl = slice(h * d_head, (h + 1) * d_head)
        qh, kh, vh = q[:, sl], k[:, sl], v[:, sl]
        score = jax.lax.dot_general(qh, kh, dn,
                                    preferred_element_type=jnp.float32) * inv_sqrt_dh
        score = jnp.where(m != 0, jnp.float32(-1e9), score)      # masked_fill_
        score = score - jnp.max(score, axis=-1, keepdims=True)   # stable softmax
        p = jnp.exp(score)
        attn = p / jnp.sum(p, axis=-1, keepdims=True)
        attn_ref[h, 0] = attn
        ctx_parts.append(jnp.dot(attn, vh, preferred_element_type=jnp.float32))

    # single lane-dense (T, num_heads*d_head) store of the concatenated heads
    ctx_ref[0] = jnp.concatenate(ctx_parts, axis=-1).astype(ctx_ref.dtype)


def mha_forward(params, query, key, value, mask=None):
    """query/key/value: (B, T, D).  mask: (B, 1, T) bool (True = masked) or None."""
    B, T, D = query.shape
    H, Dh = NUM_HEADS, D_HEAD
    if mask is None:
        mask_i = jnp.zeros((B, 1, T), jnp.int32)
    else:
        mask_i = jnp.broadcast_to(mask, (B, 1, T)).astype(jnp.int32)

    kernel = functools.partial(_mha_kernel, num_heads=H, d_head=Dh,
                               inv_sqrt_dh=1.0 / math.sqrt(Dh))

    spec_btd = pl.BlockSpec((1, T, D), lambda b: (b, 0, 0))
    spec_w = pl.BlockSpec((D, D), lambda b: (0, 0))
    spec_b = pl.BlockSpec((1, D), lambda b: (0, 0))
    spec_mask = pl.BlockSpec((1, 1, T), lambda b: (b, 0, 0))
    spec_attn = pl.BlockSpec((H, 1, T, T), lambda b: (0, b, 0, 0))

    context, attn_hb = pl.pallas_call(
        kernel,
        out_shape=(
            jax.ShapeDtypeStruct((B, T, D), jnp.float32),        # context (B, T, H*Dh)
            jax.ShapeDtypeStruct((H, B, T, T), jnp.float32),     # attn, head-major
        ),
        grid=(B,),
        in_specs=[spec_btd, spec_btd, spec_btd,
                  spec_w, spec_b, spec_w, spec_b, spec_w, spec_b,
                  spec_mask],
        out_specs=(spec_btd, spec_attn),
        compiler_params=pltpu.CompilerParams(
            dimension_semantics=("parallel",)),
    )(query, key, value,
      params["wq"], params["bq"], params["wk"], params["bk"],
      params["wv"], params["bv"], mask_i)

    # (H, B, T, T) -> (H*B, T, T): same head-major flattening as the PyTorch module.
    attn = attn_hb.reshape(H * B, T, T)
    return context, attn


# --------------------------------------------------------------------------
# Pure-JAX reference mirroring the PyTorch forward exactly.
# --------------------------------------------------------------------------
def reference_forward(params, query, key, value, mask=None):
    B, T, D = query.shape
    H, Dh = NUM_HEADS, D_HEAD
    q = (query @ params["wq"] + params["bq"]).reshape(B, T, H, Dh)
    k = (key @ params["wk"] + params["bk"]).reshape(B, T, H, Dh)
    v = (value @ params["wv"] + params["bv"]).reshape(B, T, H, Dh)
    q = q.transpose(2, 0, 1, 3).reshape(H * B, T, Dh)
    k = k.transpose(2, 0, 1, 3).reshape(H * B, T, Dh)
    v = v.transpose(2, 0, 1, 3).reshape(H * B, T, Dh)
    score = jnp.einsum("ntd,nsd->nts", q, k) / math.sqrt(Dh)
    if mask is not None:
        mask_rep = jnp.tile(mask, (H, 1, 1))              # (H*B, 1, T)
        score = jnp.where(mask_rep, jnp.float32(-1e9), score)
    attn = jax.nn.softmax(score, axis=-1)
    context = jnp.einsum("nts,nsd->ntd", attn, v)
    context = context.reshape(H, B, T, Dh).transpose(1, 2, 0, 3).reshape(B, T, H * Dh)
    return context, attn


# --------------------------------------------------------------------------
# Deterministic parameter initialization (shapes from the module __init__)
# --------------------------------------------------------------------------
def init_params(key):
    ks = jax.random.split(key, 6)
    s = 1.0 / math.sqrt(D_MODEL)

    def w(k, shape):
        return jax.random.normal(k, shape, jnp.float32) * s

    return dict(
        wq=w(ks[0], (D_MODEL, D_MODEL)), bq=w(ks[1], (1, D_MODEL)),
        wk=w(ks[2], (D_MODEL, D_MODEL)), bk=w(ks[3], (1, D_MODEL)),
        wv=w(ks[4], (D_MODEL, D_MODEL)), bv=w(ks[5], (1, D_MODEL)),
    )


if __name__ == "__main__":
    root = jax.random.PRNGKey(0)
    kq, kk, kv, kparam = jax.random.split(root, 4)
    query = jax.random.normal(kq, (BATCH, SEQ, D_MODEL), jnp.float32)
    key_in = jax.random.normal(kk, (BATCH, SEQ, D_MODEL), jnp.float32)
    value = jax.random.normal(kv, (BATCH, SEQ, D_MODEL), jnp.float32)
    params = init_params(kparam)

    # Padding mask, shape (B, 1, T) bool: True = masked key position (as in PyTorch).
    lengths = jnp.array([SEQ, SEQ - 2])
    mask = jnp.arange(SEQ)[None, None, :] >= lengths[:, None, None]

    context, attn = mha_forward(params, query, key_in, value, mask)
    context = jax.block_until_ready(context)
    attn = jax.block_until_ready(attn)

    ref_ctx, ref_attn = reference_forward(params, query, key_in, value, mask)
    assert context.shape == (BATCH, SEQ, D_MODEL)
    assert attn.shape == (NUM_HEADS * BATCH, SEQ, SEQ)
    if not jnp.allclose(context, ref_ctx, atol=2e-2, rtol=2e-2):
        raise AssertionError(
            f"context mismatch, max abs diff = {jnp.max(jnp.abs(context - ref_ctx))}")
    if not jnp.allclose(attn, ref_attn, atol=2e-2, rtol=2e-2):
        raise AssertionError(
            f"attn mismatch, max abs diff = {jnp.max(jnp.abs(attn - ref_attn))}")
    print("KERNEL_OK")
</pallas_src>

<mosaic_0001>
module attributes {stable_mosaic.version = 11 : i64} {
  func.func @_mha_kernel(%arg0: i32, %arg1: memref<1x8x32xf32, #tpu.memory_space<vmem>>, %arg2: memref<1x8x32xf32, #tpu.memory_space<vmem>>, %arg3: memref<1x8x32xf32, #tpu.memory_space<vmem>>, %arg4: memref<32x32xf32, #tpu.memory_space<vmem>>, %arg5: memref<1x32xf32, #tpu.memory_space<vmem>>, %arg6: memref<32x32xf32, #tpu.memory_space<vmem>>, %arg7: memref<1x32xf32, #tpu.memory_space<vmem>>, %arg8: memref<32x32xf32, #tpu.memory_space<vmem>>, %arg9: memref<1x32xf32, #tpu.memory_space<vmem>>, %arg10: memref<1x1x8xi32, #tpu.memory_space<vmem>>, %arg11: memref<1x8x32xf32, #tpu.memory_space<vmem>>, %arg12: memref<4x1x8x8xf32, #tpu.memory_space<vmem>>) attributes {dimension_semantics = [#tpu.dimension_semantics<parallel>], iteration_bounds = array<i64: 2>, scalar_prefetch = 0 : i64, scratch_operands = 0 : i64, tpu.core_type = #tpu.core_type<tc>, window_params = [{transform_indices = @transform_0, window_bounds = array<i64: 1, 8, 32>}, {transform_indices = @transform_1, window_bounds = array<i64: 1, 8, 32>}, {transform_indices = @transform_2, window_bounds = array<i64: 1, 8, 32>}, {pipeline_mode = #tpu.pipeline_mode<synchronous>, transform_indices = @transform_3, window_bounds = array<i64: 32, 32>}, {pipeline_mode = #tpu.pipeline_mode<synchronous>, transform_indices = @transform_4, window_bounds = array<i64: 1, 32>}, {pipeline_mode = #tpu.pipeline_mode<synchronous>, transform_indices = @transform_5, window_bounds = array<i64: 32, 32>}, {pipeline_mode = #tpu.pipeline_mode<synchronous>, transform_indices = @transform_6, window_bounds = array<i64: 1, 32>}, {pipeline_mode = #tpu.pipeline_mode<synchronous>, transform_indices = @transform_7, window_bounds = array<i64: 32, 32>}, {pipeline_mode = #tpu.pipeline_mode<synchronous>, transform_indices = @transform_8, window_bounds = array<i64: 1, 32>}, {transform_indices = @transform_9, window_bounds = array<i64: 1, 1, 8>}, {transform_indices = @transform_10, window_bounds = array<i64: 1, 8, 32>}, {transform_indices = @transform_11, window_bounds = array<i64: 4, 1, 8, 8>}]} {
    %c0 = arith.constant 0 : index
    %c0_0 = arith.constant 0 : index
    %c0_1 = arith.constant 0 : index
    %0 = vector.load %arg1[%c0, %c0_0, %c0_1] : memref<1x8x32xf32, #tpu.memory_space<vmem>>, vector<1x8x32xf32>
    %1 = vector.shape_cast %0 : vector<1x8x32xf32> to vector<8x32xf32>
    %c0_2 = arith.constant 0 : index
    %c0_3 = arith.constant 0 : index
    %2 = vector.load %arg4[%c0_2, %c0_3] : memref<32x32xf32, #tpu.memory_space<vmem>>, vector<32x32xf32>
    %cst = arith.constant dense<0.000000e+00> : vector<8x32xf32>
    %3 = tpu.matmul %1, %2, %cst {dimension_numbers = #tpu.dot_dimension_numbers<[1], [0], [0], [1], [0, 0, 1, 1], [], []>} : vector<8x32xf32>, vector<32x32xf32>, vector<8x32xf32> -> vector<8x32xf32>
    %c0_4 = arith.constant 0 : index
    %c0_5 = arith.constant 0 : index
    %4 = vector.load %arg5[%c0_4, %c0_5] : memref<1x32xf32, #tpu.memory_space<vmem>>, vector<1x32xf32>
    %5 = vector.broadcast %4 : vector<1x32xf32> to vector<8x32xf32>
    %6 = arith.addf %3, %5 : vector<8x32xf32>
    %c0_6 = arith.constant 0 : index
    %c0_7 = arith.constant 0 : index
    %c0_8 = arith.constant 0 : index
    %7 = vector.load %arg2[%c0_6, %c0_7, %c0_8] : memref<1x8x32xf32, #tpu.memory_space<vmem>>, vector<1x8x32xf32>
    %8 = vector.shape_cast %7 : vector<1x8x32xf32> to vector<8x32xf32>
    %c0_9 = arith.constant 0 : index
    %c0_10 = arith.constant 0 : index
    %9 = vector.load %arg6[%c0_9, %c0_10] : memref<32x32xf32, #tpu.memory_space<vmem>>, vector<32x32xf32>
    %cst_11 = arith.constant dense<0.000000e+00> : vector<8x32xf32>
    %10 = tpu.matmul %8, %9, %cst_11 {dimension_numbers = #tpu.dot_dimension_numbers<[1], [0], [0], [1], [0, 0, 1, 1], [], []>} : vector<8x32xf32>, vector<32x32xf32>, vector<8x32xf32> -> vector<8x32xf32>
    %c0_12 = arith.constant 0 : index
    %c0_13 = arith.constant 0 : index
    %11 = vector.load %arg7[%c0_12, %c0_13] : memref<1x32xf32, #tpu.memory_space<vmem>>, vector<1x32xf32>
    %12 = vector.broadcast %11 : vector<1x32xf32> to vector<8x32xf32>
    %13 = arith.addf %10, %12 : vector<8x32xf32>
    %c0_14 = arith.constant 0 : index
    %c0_15 = arith.constant 0 : index
    %c0_16 = arith.constant 0 : index
    %14 = vector.load %arg3[%c0_14, %c0_15, %c0_16] : memref<1x8x32xf32, #tpu.memory_space<vmem>>, vector<1x8x32xf32>
    %15 = vector.shape_cast %14 : vector<1x8x32xf32> to vector<8x32xf32>
    %c0_17 = arith.constant 0 : index
    %c0_18 = arith.constant 0 : index
    %16 = vector.load %arg8[%c0_17, %c0_18] : memref<32x32xf32, #tpu.memory_space<vmem>>, vector<32x32xf32>
    %cst_19 = arith.constant dense<0.000000e+00> : vector<8x32xf32>
    %17 = tpu.matmul %15, %16, %cst_19 {dimension_numbers = #tpu.dot_dimension_numbers<[1], [0], [0], [1], [0, 0, 1, 1], [], []>} : vector<8x32xf32>, vector<32x32xf32>, vector<8x32xf32> -> vector<8x32xf32>
    %c0_20 = arith.constant 0 : index
    %c0_21 = arith.constant 0 : index
    %18 = vector.load %arg9[%c0_20, %c0_21] : memref<1x32xf32, #tpu.memory_space<vmem>>, vector<1x32xf32>
    %19 = vector.broadcast %18 : vector<1x32xf32> to vector<8x32xf32>
    %20 = arith.addf %17, %19 : vector<8x32xf32>
    %c0_22 = arith.constant 0 : index
    %c0_23 = arith.constant 0 : index
    %c0_24 = arith.constant 0 : index
    %21 = vector.load %arg10[%c0_22, %c0_23, %c0_24] : memref<1x1x8xi32, #tpu.memory_space<vmem>>, vector<1x1x8xi32>
    %22 = vector.shape_cast %21 : vector<1x1x8xi32> to vector<1x8xi32>
    %23 = vector.extract_strided_slice %6 {offsets = [0, 0], sizes = [8, 8], strides = [1, 1]} : vector<8x32xf32> to vector<8x8xf32>
    %24 = vector.extract_strided_slice %13 {offsets = [0, 0], sizes = [8, 8], strides = [1, 1]} : vector<8x32xf32> to vector<8x8xf32>
    %25 = vector.extract_strided_slice %20 {offsets = [0, 0], sizes = [8, 8], strides = [1, 1]} : vector<8x32xf32> to vector<8x8xf32>
    %cst_25 = arith.constant dense<0.000000e+00> : vector<8x8xf32>
    %26 = tpu.matmul %23, %24, %cst_25 {dimension_numbers = #tpu.dot_dimension_numbers<[1], [1], [0], [0], [0, 0, 1, 0], [], []>} : vector<8x8xf32>, vector<8x8xf32>, vector<8x8xf32> -> vector<8x8xf32>
    %cst_26 = arith.constant 0.353553385 : f32
    %27 = vector.broadcast %cst_26 : f32 to vector<8x8xf32>
    %28 = arith.mulf %26, %27 : vector<8x8xf32>
    %c0_i32 = arith.constant 0 : i32
    %29 = vector.broadcast %c0_i32 : i32 to vector<1x8xi32>
    %30 = arith.cmpi ne, %22, %29 : vector<1x8xi32>
    %cst_27 = arith.constant -1.000000e+09 : f32
    %31 = vector.shape_cast %30 : vector<1x8xi1> to vector<1x8xi1>
    %32 = vector.broadcast %31 : vector<1x8xi1> to vector<8x8xi1>
    %33 = vector.broadcast %cst_27 : f32 to vector<8x8xf32>
    %34 = arith.select %32, %33, %28 : vector<8x8xi1>, vector<8x8xf32>
    %cst_28 = arith.constant dense<0xFF800000> : vector<8xf32>
    %35 = vector.multi_reduction <maximumf>, %34, %cst_28 [1] : vector<8x8xf32> to vector<8xf32>
    %36 = vector.shape_cast %35 : vector<8xf32> to vector<8x1xf32>
    %37 = vector.broadcast %36 : vector<8x1xf32> to vector<8x8xf32>
    %38 = arith.subf %34, %37 : vector<8x8xf32>
    %39 = math.exp %38 : vector<8x8xf32>
    %cst_29 = arith.constant dense<0.000000e+00> : vector<8xf32>
    %40 = vector.multi_reduction <add>, %39, %cst_29 [1] : vector<8x8xf32> to vector<8xf32>
    %41 = vector.shape_cast %40 : vector<8xf32> to vector<8x1xf32>
    %42 = vector.broadcast %41 : vector<8x1xf32> to vector<8x8xf32>
    %43 = arith.divf %39, %42 : vector<8x8xf32>
    %c0_30 = arith.constant 0 : index
    %c0_31 = arith.constant 0 : index
    %c0_32 = arith.constant 0 : index
    %c0_33 = arith.constant 0 : index
    %44 = vector.load %arg12[%c0_30, %c0_31, %c0_32, %c0_33] : memref<4x1x8x8xf32, #tpu.memory_space<vmem>>, vector<1x1x8x8xf32>
    %45 = vector.shape_cast %44 : vector<1x1x8x8xf32> to vector<8x8xf32>
    %46 = vector.shape_cast %43 : vector<8x8xf32> to vector<1x1x8x8xf32>
    tpu.vector_store %arg12[%c0_30, %c0_31, %c0_32, %c0_33], %46 {strides = array<i32>} : memref<4x1x8x8xf32, #tpu.memory_space<vmem>>, vector<1x1x8x8xf32>,
    %cst_34 = arith.constant dense<0.000000e+00> : vector<8x8xf32>
    %47 = tpu.matmul %43, %25, %cst_34 {dimension_numbers = #tpu.dot_dimension_numbers<[1], [0], [0], [1], [0, 0, 1, 1], [], []>} : vector<8x8xf32>, vector<8x8xf32>, vector<8x8xf32> -> vector<8x8xf32>
    %48 = vector.extract_strided_slice %6 {offsets = [0, 8], sizes = [8, 8], strides = [1, 1]} : vector<8x32xf32> to vector<8x8xf32>
    %49 = vector.extract_strided_slice %13 {offsets = [0, 8], sizes = [8, 8], strides = [1, 1]} : vector<8x32xf32> to vector<8x8xf32>
    %50 = vector.extract_strided_slice %20 {offsets = [0, 8], sizes = [8, 8], strides = [1, 1]} : vector<8x32xf32> to vector<8x8xf32>
    %cst_35 = arith.constant dense<0.000000e+00> : vector<8x8xf32>
    %51 = tpu.matmul %48, %49, %cst_35 {dimension_numbers = #tpu.dot_dimension_numbers<[1], [1], [0], [0], [0, 0, 1, 0], [], []>} : vector<8x8xf32>, vector<8x8xf32>, vector<8x8xf32> -> vector<8x8xf32>
    %cst_36 = arith.constant 0.353553385 : f32
    %52 = vector.broadcast %cst_36 : f32 to vector<8x8xf32>
    %53 = arith.mulf %51, %52 : vector<8x8xf32>
    %c0_i32_37 = arith.constant 0 : i32
    %54 = vector.broadcast %c0_i32_37 : i32 to vector<1x8xi32>
    %55 = arith.cmpi ne, %22, %54 : vector<1x8xi32>
    %cst_38 = arith.constant -1.000000e+09 : f32
    %56 = vector.shape_cast %55 : vector<1x8xi1> to vector<1x8xi1>
    %57 = vector.broadcast %56 : vector<1x8xi1> to vector<8x8xi1>
    %58 = vector.broadcast %cst_38 : f32 to vector<8x8xf32>
    %59 = arith.select %57, %58, %53 : vector<8x8xi1>, vector<8x8xf32>
    %cst_39 = arith.constant dense<0xFF800000> : vector<8xf32>
    %60 = vector.multi_reduction <maximumf>, %59, %cst_39 [1] : vector<8x8xf32> to vector<8xf32>
    %61 = vector.shape_cast %60 : vector<8xf32> to vector<8x1xf32>
    %62 = vector.broadcast %61 : vector<8x1xf32> to vector<8x8xf32>
    %63 = arith.subf %59, %62 : vector<8x8xf32>
    %64 = math.exp %63 : vector<8x8xf32>
    %cst_40 = arith.constant dense<0.000000e+00> : vector<8xf32>
    %65 = vector.multi_reduction <add>, %64, %cst_40 [1] : vector<8x8xf32> to vector<8xf32>
    %66 = vector.shape_cast %65 : vector<8xf32> to vector<8x1xf32>
    %67 = vector.broadcast %66 : vector<8x1xf32> to vector<8x8xf32>
    %68 = arith.divf %64, %67 : vector<8x8xf32>
    %c1 = arith.constant 1 : index
    %c0_41 = arith.constant 0 : index
    %c0_42 = arith.constant 0 : index
    %c0_43 = arith.constant 0 : index
    %69 = vector.load %arg12[%c1, %c0_41, %c0_42, %c0_43] : memref<4x1x8x8xf32, #tpu.memory_space<vmem>>, vector<1x1x8x8xf32>
    %70 = vector.shape_cast %69 : vector<1x1x8x8xf32> to vector<8x8xf32>
    %71 = vector.shape_cast %68 : vector<8x8xf32> to vector<1x1x8x8xf32>
    tpu.vector_store %arg12[%c1, %c0_41, %c0_42, %c0_43], %71 {strides = array<i32>} : memref<4x1x8x8xf32, #tpu.memory_space<vmem>>, vector<1x1x8x8xf32>,
    %cst_44 = arith.constant dense<0.000000e+00> : vector<8x8xf32>
    %72 = tpu.matmul %68, %50, %cst_44 {dimension_numbers = #tpu.dot_dimension_numbers<[1], [0], [0], [1], [0, 0, 1, 1], [], []>} : vector<8x8xf32>, vector<8x8xf32>, vector<8x8xf32> -> vector<8x8xf32>
    %73 = vector.extract_strided_slice %6 {offsets = [0, 16], sizes = [8, 8], strides = [1, 1]} : vector<8x32xf32> to vector<8x8xf32>
    %74 = vector.extract_strided_slice %13 {offsets = [0, 16], sizes = [8, 8], strides = [1, 1]} : vector<8x32xf32> to vector<8x8xf32>
    %75 = vector.extract_strided_slice %20 {offsets = [0, 16], sizes = [8, 8], strides = [1, 1]} : vector<8x32xf32> to vector<8x8xf32>
    %cst_45 = arith.constant dense<0.000000e+00> : vector<8x8xf32>
    %76 = tpu.matmul %73, %74, %cst_45 {dimension_numbers = #tpu.dot_dimension_numbers<[1], [1], [0], [0], [0, 0, 1, 0], [], []>} : vector<8x8xf32>, vector<8x8xf32>, vector<8x8xf32> -> vector<8x8xf32>
    %cst_46 = arith.constant 0.353553385 : f32
    %77 = vector.broadcast %cst_46 : f32 to vector<8x8xf32>
    %78 = arith.mulf %76, %77 : vector<8x8xf32>
    %c0_i32_47 = arith.constant 0 : i32
    %79 = vector.broadcast %c0_i32_47 : i32 to vector<1x8xi32>
    %80 = arith.cmpi ne, %22, %79 : vector<1x8xi32>
    %cst_48 = arith.constant -1.000000e+09 : f32
    %81 = vector.shape_cast %80 : vector<1x8xi1> to vector<1x8xi1>
    %82 = vector.broadcast %81 : vector<1x8xi1> to vector<8x8xi1>
    %83 = vector.broadcast %cst_48 : f32 to vector<8x8xf32>
    %84 = arith.select %82, %83, %78 : vector<8x8xi1>, vector<8x8xf32>
    %cst_49 = arith.constant dense<0xFF800000> : vector<8xf32>
    %85 = vector.multi_reduction <maximumf>, %84, %cst_49 [1] : vector<8x8xf32> to vector<8xf32>
    %86 = vector.shape_cast %85 : vector<8xf32> to vector<8x1xf32>
    %87 = vector.broadcast %86 : vector<8x1xf32> to vector<8x8xf32>
    %88 = arith.subf %84, %87 : vector<8x8xf32>
    %89 = math.exp %88 : vector<8x8xf32>
    %cst_50 = arith.constant dense<0.000000e+00> : vector<8xf32>
    %90 = vector.multi_reduction <add>, %89, %cst_50 [1] : vector<8x8xf32> to vector<8xf32>
    %91 = vector.shape_cast %90 : vector<8xf32> to vector<8x1xf32>
    %92 = vector.broadcast %91 : vector<8x1xf32> to vector<8x8xf32>
    %93 = arith.divf %89, %92 : vector<8x8xf32>
    %c2 = arith.constant 2 : index
    %c0_51 = arith.constant 0 : index
    %c0_52 = arith.constant 0 : index
    %c0_53 = arith.constant 0 : index
    %94 = vector.load %arg12[%c2, %c0_51, %c0_52, %c0_53] : memref<4x1x8x8xf32, #tpu.memory_space<vmem>>, vector<1x1x8x8xf32>
    %95 = vector.shape_cast %94 : vector<1x1x8x8xf32> to vector<8x8xf32>
    %96 = vector.shape_cast %93 : vector<8x8xf32> to vector<1x1x8x8xf32>
    tpu.vector_store %arg12[%c2, %c0_51, %c0_52, %c0_53], %96 {strides = array<i32>} : memref<4x1x8x8xf32, #tpu.memory_space<vmem>>, vector<1x1x8x8xf32>,
    %cst_54 = arith.constant dense<0.000000e+00> : vector<8x8xf32>
    %97 = tpu.matmul %93, %75, %cst_54 {dimension_numbers = #tpu.dot_dimension_numbers<[1], [0], [0], [1], [0, 0, 1, 1], [], []>} : vector<8x8xf32>, vector<8x8xf32>, vector<8x8xf32> -> vector<8x8xf32>
    %98 = vector.extract_strided_slice %6 {offsets = [0, 24], sizes = [8, 8], strides = [1, 1]} : vector<8x32xf32> to vector<8x8xf32>
    %99 = vector.extract_strided_slice %13 {offsets = [0, 24], sizes = [8, 8], strides = [1, 1]} : vector<8x32xf32> to vector<8x8xf32>
    %100 = vector.extract_strided_slice %20 {offsets = [0, 24], sizes = [8, 8], strides = [1, 1]} : vector<8x32xf32> to vector<8x8xf32>
    %cst_55 = arith.constant dense<0.000000e+00> : vector<8x8xf32>
    %101 = tpu.matmul %98, %99, %cst_55 {dimension_numbers = #tpu.dot_dimension_numbers<[1], [1], [0], [0], [0, 0, 1, 0], [], []>} : vector<8x8xf32>, vector<8x8xf32>, vector<8x8xf32> -> vector<8x8xf32>
    %cst_56 = arith.constant 0.353553385 : f32
    %102 = vector.broadcast %cst_56 : f32 to vector<8x8xf32>
    %103 = arith.mulf %101, %102 : vector<8x8xf32>
    %c0_i32_57 = arith.constant 0 : i32
    %104 = vector.broadcast %c0_i32_57 : i32 to vector<1x8xi32>
    %105 = arith.cmpi ne, %22, %104 : vector<1x8xi32>
    %cst_58 = arith.constant -1.000000e+09 : f32
    %106 = vector.shape_cast %105 : vector<1x8xi1> to vector<1x8xi1>
    %107 = vector.broadcast %106 : vector<1x8xi1> to vector<8x8xi1>
    %108 = vector.broadcast %cst_58 : f32 to vector<8x8xf32>
    %109 = arith.select %107, %108, %103 : vector<8x8xi1>, vector<8x8xf32>
    %cst_59 = arith.constant dense<0xFF800000> : vector<8xf32>
    %110 = vector.multi_reduction <maximumf>, %109, %cst_59 [1] : vector<8x8xf32> to vector<8xf32>
    %111 = vector.shape_cast %110 : vector<8xf32> to vector<8x1xf32>
    %112 = vector.broadcast %111 : vector<8x1xf32> to vector<8x8xf32>
    %113 = arith.subf %109, %112 : vector<8x8xf32>
    %114 = math.exp %113 : vector<8x8xf32>
    %cst_60 = arith.constant dense<0.000000e+00> : vector<8xf32>
    %115 = vector.multi_reduction <add>, %114, %cst_60 [1] : vector<8x8xf32> to vector<8xf32>
    %116 = vector.shape_cast %115 : vector<8xf32> to vector<8x1xf32>
    %117 = vector.broadcast %116 : vector<8x1xf32> to vector<8x8xf32>
    %118 = arith.divf %114, %117 : vector<8x8xf32>
    %c3 = arith.constant 3 : index
    %c0_61 = arith.constant 0 : index
    %c0_62 = arith.constant 0 : index
    %c0_63 = arith.constant 0 : index
    %119 = vector.load %arg12[%c3, %c0_61, %c0_62, %c0_63] : memref<4x1x8x8xf32, #tpu.memory_space<vmem>>, vector<1x1x8x8xf32>
    %120 = vector.shape_cast %119 : vector<1x1x8x8xf32> to vector<8x8xf32>
    %121 = vector.shape_cast %118 : vector<8x8xf32> to vector<1x1x8x8xf32>
    tpu.vector_store %arg12[%c3, %c0_61, %c0_62, %c0_63], %121 {strides = array<i32>} : memref<4x1x8x8xf32, #tpu.memory_space<vmem>>, vector<1x1x8x8xf32>,
    %cst_64 = arith.constant dense<0.000000e+00> : vector<8x8xf32>
    %122 = tpu.matmul %118, %100, %cst_64 {dimension_numbers = #tpu.dot_dimension_numbers<[1], [0], [0], [1], [0, 0, 1, 1], [], []>} : vector<8x8xf32>, vector<8x8xf32>, vector<8x8xf32> -> vector<8x8xf32>
    %123 = tpu.concatenate %47, %72, %97, %122 in 1 : vector<8x8xf32>, vector<8x8xf32>, vector<8x8xf32>, vector<8x8xf32> -> vector<8x32xf32>
    %c0_65 = arith.constant 0 : index
    %c0_66 = arith.constant 0 : index
    %c0_67 = arith.constant 0 : index
    %124 = vector.load %arg11[%c0_65, %c0_66, %c0_67] : memref<1x8x32xf32, #tpu.memory_space<vmem>>, vector<1x8x32xf32>
    %125 = vector.shape_cast %124 : vector<1x8x32xf32> to vector<8x32xf32>
    %126 = vector.shape_cast %123 : vector<8x32xf32> to vector<1x8x32xf32>
    tpu.vector_store %arg11[%c0_65, %c0_66, %c0_67], %126 {strides = array<i32>} : memref<1x8x32xf32, #tpu.memory_space<vmem>>, vector<1x8x32xf32>,
    return
  }
  func.func @transform_0(%arg0: i32) -> (i32, i32, i32) {
    %c0_i32 = arith.constant 0 : i32
    %c0_i32_0 = arith.constant 0 : i32
    %c0_i32_1 = arith.constant 0 : i32
    return %arg0, %c0_i32, %c0_i32_0 : i32, i32, i32
  }
  func.func @transform_1(%arg0: i32) -> (i32, i32, i32) {
    %c0_i32 = arith.constant 0 : i32
    %c0_i32_0 = arith.constant 0 : i32
    %c0_i32_1 = arith.constant 0 : i32
    return %arg0, %c0_i32, %c0_i32_0 : i32, i32, i32
  }
  func.func @transform_2(%arg0: i32) -> (i32, i32, i32) {
    %c0_i32 = arith.constant 0 : i32
    %c0_i32_0 = arith.constant 0 : i32
    %c0_i32_1 = arith.constant 0 : i32
    return %arg0, %c0_i32, %c0_i32_0 : i32, i32, i32
  }
  func.func @transform_3(%arg0: i32) -> (i32, i32) {
    %c0_i32 = arith.constant 0 : i32
    %c0_i32_0 = arith.constant 0 : i32
    %c0_i32_1 = arith.constant 0 : i32
    return %c0_i32, %c0_i32_0 : i32, i32
  }
  func.func @transform_4(%arg0: i32) -> (i32, i32) {
    %c0_i32 = arith.constant 0 : i32
    %c0_i32_0 = arith.constant 0 : i32
    %c0_i32_1 = arith.constant 0 : i32
    return %c0_i32, %c0_i32_0 : i32, i32
  }
  func.func @transform_5(%arg0: i32) -> (i32, i32) {
    %c0_i32 = arith.constant 0 : i32
    %c0_i32_0 = arith.constant 0 : i32
    %c0_i32_1 = arith.constant 0 : i32
    return %c0_i32, %c0_i32_0 : i32, i32
  }
  func.func @transform_6(%arg0: i32) -> (i32, i32) {
    %c0_i32 = arith.constant 0 : i32
    %c0_i32_0 = arith.constant 0 : i32
    %c0_i32_1 = arith.constant 0 : i32
    return %c0_i32, %c0_i32_0 : i32, i32
  }
  func.func @transform_7(%arg0: i32) -> (i32, i32) {
    %c0_i32 = arith.constant 0 : i32
    %c0_i32_0 = arith.constant 0 : i32
    %c0_i32_1 = arith.constant 0 : i32
    return %c0_i32, %c0_i32_0 : i32, i32
  }
  func.func @transform_8(%arg0: i32) -> (i32, i32) {
    %c0_i32 = arith.constant 0 : i32
    %c0_i32_0 = arith.constant 0 : i32
    %c0_i32_1 = arith.constant 0 : i32
    return %c0_i32, %c0_i32_0 : i32, i32
  }
  func.func @transform_9(%arg0: i32) -> (i32, i32, i32) {
    %c0_i32 = arith.constant 0 : i32
    %c0_i32_0 = arith.constant 0 : i32
    %c0_i32_1 = arith.constant 0 : i32
    return %arg0, %c0_i32, %c0_i32_0 : i32, i32, i32
  }
  func.func @transform_10(%arg0: i32) -> (i32, i32, i32) {
    %c0_i32 = arith.constant 0 : i32
    %c0_i32_0 = arith.constant 0 : i32
    %c0_i32_1 = arith.constant 0 : i32
    return %arg0, %c0_i32, %c0_i32_0 : i32, i32, i32
  }
  func.func @transform_11(%arg0: i32) -> (i32, i32, i32, i32) {
    %c0_i32 = arith.constant 0 : i32
    %c0_i32_0 = arith.constant 0 : i32
    %c0_i32_1 = arith.constant 0 : i32
    %c0_i32_2 = arith.constant 0 : i32
    return %c0_i32, %arg0, %c0_i32_0, %c0_i32_1 : i32, i32, i32, i32
  }
}

</mosaic_0001>

<llo_original>
// kernel: tpu_custom_call.1
$region0: #{tpu_custom_call.1}
  #allocation0 [shape = 'u32[]', space=smem, size = 0x4, offset = 0x4, fixed_abs, tag = 'smem constant byte address 0x4 - core index']
  #allocation1 [shape = 'u32[144,128]{1,0:T(1,128)}', space=vmem, size = 0x12000, scoped, tag = 'internal scratch']
  %s0 = inlined_call_operand.hbm [shape: f32[2,8,32], index: 0, kind: input, shape index: {}]
  %s1 = inlined_call_operand.hbm [shape: f32[2,8,32], index: 1, kind: input, shape index: {}]
  %s2 = inlined_call_operand.hbm [shape: f32[2,8,32], index: 2, kind: input, shape index: {}]
  %s3 = inlined_call_operand.hbm [shape: f32[32,32], index: 3, kind: input, shape index: {}]
  %s4 = inlined_call_operand.vmem [shape: f32[1,32], index: 4, kind: input, shape index: {}]
  %s5 = inlined_call_operand.hbm [shape: f32[32,32], index: 5, kind: input, shape index: {}]
  %s6 = inlined_call_operand.vmem [shape: f32[1,32], index: 6, kind: input, shape index: {}]
  %s7 = inlined_call_operand.hbm [shape: f32[32,32], index: 7, kind: input, shape index: {}]
  %s8 = inlined_call_operand.vmem [shape: f32[1,32], index: 8, kind: input, shape index: {}]
  %s9 = inlined_call_operand.vmem [shape: s32[2,1,8], index: 9, kind: input, shape index: {}]
  %s10 = inlined_call_operand.hbm [shape: f32[2,8,32], index: 10, kind: output, shape index: {0}]
  %s11 = inlined_call_operand.hbm [shape: f32[4,2,8,8], index: 11, kind: output, shape index: {1}]
  %12 = xla_tuple %s10, %s11
  %s13 = sld [smem:[#allocation0]]
  $region105: #{tpu_custom_call.1} parent=0
    _
  %s15 = ssub.s32 1, %s13
  %s16 = scalar_select 0, %s15, %s13
  $region1: #{tpu_custom_call.1} parent=0
    #allocation2 [shape = 'u8[8192]{0}', space=vmem, size = 0x2000, scoped, tag = 'input window, operand 0']
    #allocation3 [shape = 's32[2]{0}', space=sflag, size = 0x8, scoped, tag = 'scoped memory for tpu_custom_call.1']
    #allocation4 [shape = 's32[2]{0}', space=sflag, size = 0x8, scoped, tag = 'scoped memory for tpu_custom_call.1']
    #allocation5 [shape = 'u8[8192]{0}', space=vmem, size = 0x2000, scoped, tag = 'input window, operand 1']
    #allocation6 [shape = 's32[2]{0}', space=sflag, size = 0x8, scoped, tag = 'scoped memory for tpu_custom_call.1']
    #allocation7 [shape = 'u8[8192]{0}', space=vmem, size = 0x2000, scoped, tag = 'input window, operand 2']
    #allocation8 [shape = 'u8[16384]{0}', space=vmem, size = 0x4000, scoped, tag = 'input window, operand 3, single buffered']
    #allocation9 [shape = 's32[1]{0}', space=sflag, size = 0x4, scoped, tag = 'scoped memory for tpu_custom_call.1']
    #allocation10 [shape = 'u8[16384]{0}', space=vmem, size = 0x4000, scoped, tag = 'input window, operand 5, single buffered']
    #allocation11 [shape = 'u8[16384]{0}', space=vmem, size = 0x4000, scoped, tag = 'input window, operand 7, single buffered']
    #allocation12 [shape = 's32[1]{0}', space=sflag, size = 0x4, scoped, tag = 'scoped memory for tpu_custom_call.1']
    #allocation13 [shape = 'u8[8192]{0}', space=vmem, size = 0x2000, scoped, tag = 'output window, operand 0']
    #allocation14 [shape = 'u8[32768]{0}', space=vmem, size = 0x8000, scoped, tag = 'output window, operand 1']
    #allocation15 [shape = 's32[2]{0}', space=sflag, size = 0x8, scoped, tag = 'scoped memory for tpu_custom_call.1']
    %17 = vsyncpa [#allocation3], 0
    %s18 = scalar_lea.sflag [#allocation3], 1
    %19 = vsyncpa %s18, 0
    %20 = vsyncpa [#allocation6], 0
    %s21 = scalar_lea.sflag [#allocation6], 1
    %22 = vsyncpa %s21, 0
    %23 = vsyncpa [#allocation9], 0
    %24 = vsyncpa [#allocation12], 0
    %25 = vsyncpa [#allocation4], 0
    %s26 = scalar_lea.sflag [#allocation4], 1
    %27 = vsyncpa %s26, 0
    %28 = vsyncpa [#allocation15], 0
    %s29 = scalar_lea.sflag [#allocation15], 1
    %30 = vsyncpa %s29, 0
    loop: start=0, step=1, limit=4
    $region2: #{tpu_custom_call.1} parent=1 // loop_pre_header
      _
    $region3: #{tpu_custom_call.1} parent=1 // loop_header
      %s32 = sphi 0, %s36
      %p33 = scmp.ge.s32.totalorder %s32, 4
      %s42 = sphi 0, %s44
      %s45 = sphi 0, %s42
      %s46 = sphi 0, %s45
      %s62 = sphi 0, %s46
      %s68 = sphi 0, %s70
      %s71 = sphi 0, %s68
      %s72 = sphi 0, %s71
      %s88 = sphi 0, %s72
      %s94 = sphi 0, %s96
      %s97 = sphi 0, %s94
      %s98 = sphi 0, %s97
      %s114 = sphi 0, %s98
      %s118 = sphi 0, %s118
      %s120 = sphi 0, %s118
      %s121 = sphi 0, %s120
      %s135 = sphi 0, %s121
      %s139 = sphi 0, %s139
      %s141 = sphi 0, %s139
      %s142 = sphi 0, %s141
      %s156 = sphi 0, %s142
      %s160 = sphi 0, %s160
      %s162 = sphi 0, %s160
      %s163 = sphi 0, %s162
      %s177 = sphi 0, %s163
      %s181 = sphi 0, %s181
      %s183 = sphi 0, %s181
      %s184 = sphi 0, %s183
      %s198 = sphi 0, %s184
      %s202 = sphi 0, %s202
      %s204 = sphi 0, %s202
      %s205 = sphi 0, %s204
      %s219 = sphi 0, %s205
      %s223 = sphi 0, %s223
      %s225 = sphi 0, %s223
      %s226 = sphi 0, %s225
      %s240 = sphi 0, %s226
      %s246 = sphi 0, %s248
      %s249 = sphi 0, %s246
      %s250 = sphi 0, %s249
      %s266 = sphi 0, %s250
      %s272 = sphi 0, %s274
      %s275 = sphi 0, %s272
      %s276 = sphi 0, %s275
      %s292 = sphi 0, %s276
      %s298 = sphi 0, %s300
      %s301 = sphi 0, %s298
      %s302 = sphi 0, %s301
      %s318 = sphi 0, %s302
    $region4: #{tpu_custom_call.1} parent=1 // loop_header_branch
      %35 = sbr.rel (%p33) target = $region8
    $region5: #{tpu_custom_call.1} parent=1 // loop_body
      %s37 = ssub.s32 %s32, 1
      %s38 = ssub.s32 %s32, 2
      %s39 = sadd.s32 %s32, 1
      %s40 = ssub.s32 %s32, %s39
      %p41 = scmp.eq.s32.totalorder %s40, 0
      %s43 = sadd.s32 %s42, 1
      %s44 = scalar_select %p41, %s42, %s43
      %p47 = pneg %p41
      %p48 = scmp.eq.s32.totalorder %s32, 1
      %p49 = por %p47, %p48
      %p50 = scmp.ne.s32.totalorder %s42, %s45
      %p51 = scmp.eq.s32.totalorder %s32, 0
      %p52 = por %p50, %p51
      %p53 = scmp.ne.s32.totalorder %s42, %s45
      %p54 = scmp.eq.s32.totalorder %s37, 1
      %p55 = por %p53, %p54
      %p56 = scmp.ne.s32.totalorder %s45, %s46
      %p57 = scmp.eq.s32.totalorder %s37, 0
      %p58 = por %p56, %p57
      %p59 = scmp.ne.s32.totalorder %s45, %s46
      %p60 = scmp.eq.s32.totalorder %s38, 1
      %p61 = por %p59, %p60
      %p63 = scmp.ne.s32.totalorder %s46, %s62
      %p64 = scmp.eq.s32.totalorder %s38, 0
      %p65 = por %p63, %p64
      %s66 = ssub.s32 %s32, %s39
      %p67 = scmp.eq.s32.totalorder %s66, 0
      %s69 = sadd.s32 %s68, 1
      %s70 = scalar_select %p67, %s68, %s69
      %p73 = pneg %p67
      %p74 = scmp.eq.s32.totalorder %s32, 1
      %p75 = por %p73, %p74
      %p76 = scmp.ne.s32.totalorder %s68, %s71
      %p77 = scmp.eq.s32.totalorder %s32, 0
      %p78 = por %p76, %p77
      %p79 = scmp.ne.s32.totalorder %s68, %s71
      %p80 = scmp.eq.s32.totalorder %s37, 1
      %p81 = por %p79, %p80
      %p82 = scmp.ne.s32.totalorder %s71, %s72
      %p83 = scmp.eq.s32.totalorder %s37, 0
      %p84 = por %p82, %p83
      %p85 = scmp.ne.s32.totalorder %s71, %s72
      %p86 = scmp.eq.s32.totalorder %s38, 1
      %p87 = por %p85, %p86
      %p89 = scmp.ne.s32.totalorder %s72, %s88
      %p90 = scmp.eq.s32.totalorder %s38, 0
      %p91 = por %p89, %p90
      %s92 = ssub.s32 %s32, %s39
      %p93 = scmp.eq.s32.totalorder %s92, 0
      %s95 = sadd.s32 %s94, 1
      %s96 = scalar_select %p93, %s94, %s95
      %p99 = pneg %p93
      %p100 = scmp.eq.s32.totalorder %s32, 1
      %p101 = por %p99, %p100
      %p102 = scmp.ne.s32.totalorder %s94, %s97
      %p103 = scmp.eq.s32.totalorder %s32, 0
      %p104 = por %p102, %p103
      %p105 = scmp.ne.s32.totalorder %s94, %s97
      %p106 = scmp.eq.s32.totalorder %s37, 1
      %p107 = por %p105, %p106
      %p108 = scmp.ne.s32.totalorder %s97, %s98
      %p109 = scmp.eq.s32.totalorder %s37, 0
      %p110 = por %p108, %p109
      %p111 = scmp.ne.s32.totalorder %s97, %s98
      %p112 = scmp.eq.s32.totalorder %s38, 1
      %p113 = por %p111, %p112
      %p115 = scmp.ne.s32.totalorder %s98, %s114
      %p116 = scmp.eq.s32.totalorder %s38, 0
      %p117 = por %p115, %p116
      %s119 = sadd.s32 %s118, 1
      %p122 = scmp.eq.s32.totalorder %s32, 1
      %p123 = scmp.ne.s32.totalorder %s118, %s120
      %p124 = scmp.eq.s32.totalorder %s32, 0
      %p125 = por %p123, %p124
      %p126 = scmp.ne.s32.totalorder %s118, %s120
      %p127 = scmp.eq.s32.totalorder %s37, 1
      %p128 = por %p126, %p127
      %p129 = scmp.ne.s32.totalorder %s120, %s121
      %p130 = scmp.eq.s32.totalorder %s37, 0
      %p131 = por %p129, %p130
      %p132 = scmp.ne.s32.totalorder %s120, %s121
      %p133 = scmp.eq.s32.totalorder %s38, 1
      %p134 = por %p132, %p133
      %p136 = scmp.ne.s32.totalorder %s121, %s135
      %p137 = scmp.eq.s32.totalorder %s38, 0
      %p138 = por %p136, %p137
      %s140 = sadd.s32 %s139, 1
      %p143 = scmp.eq.s32.totalorder %s32, 1
      %p144 = scmp.ne.s32.totalorder %s139, %s141
      %p145 = scmp.eq.s32.totalorder %s32, 0
      %p146 = por %p144, %p145
      %p147 = scmp.ne.s32.totalorder %s139, %s141
      %p148 = scmp.eq.s32.totalorder %s37, 1
      %p149 = por %p147, %p148
      %p150 = scmp.ne.s32.totalorder %s141, %s142
      %p151 = scmp.eq.s32.totalorder %s37, 0
      %p152 = por %p150, %p151
      %p153 = scmp.ne.s32.totalorder %s141, %s142
      %p154 = scmp.eq.s32.totalorder %s38, 1
      %p155 = por %p153, %p154
      %p157 = scmp.ne.s32.totalorder %s142, %s156
      %p158 = scmp.eq.s32.totalorder %s38, 0
      %p159 = por %p157, %p158
      %s161 = sadd.s32 %s160, 1
      %p164 = scmp.eq.s32.totalorder %s32, 1
      %p165 = scmp.ne.s32.totalorder %s160, %s162
      %p166 = scmp.eq.s32.totalorder %s32, 0
      %p167 = por %p165, %p166
      %p168 = scmp.ne.s32.totalorder %s160, %s162
      %p169 = scmp.eq.s32.totalorder %s37, 1
      %p170 = por %p168, %p169
      %p171 = scmp.ne.s32.totalorder %s162, %s163
      %p172 = scmp.eq.s32.totalorder %s37, 0
      %p173 = por %p171, %p172
      %p174 = scmp.ne.s32.totalorder %s162, %s163
      %p175 = scmp.eq.s32.totalorder %s38, 1
      %p176 = por %p174, %p175
      %p178 = scmp.ne.s32.totalorder %s163, %s177
      %p179 = scmp.eq.s32.totalorder %s38, 0
      %p180 = por %p178, %p179
      %s182 = sadd.s32 %s181, 1
      %p185 = scmp.eq.s32.totalorder %s32, 1
      %p186 = scmp.ne.s32.totalorder %s181, %s183
      %p187 = scmp.eq.s32.totalorder %s32, 0
      %p188 = por %p186, %p187
      %p189 = scmp.ne.s32.totalorder %s181, %s183
      %p190 = scmp.eq.s32.totalorder %s37, 1
      %p191 = por %p189, %p190
      %p192 = scmp.ne.s32.totalorder %s183, %s184
      %p193 = scmp.eq.s32.totalorder %s37, 0
      %p194 = por %p192, %p193
      %p195 = scmp.ne.s32.totalorder %s183, %s184
      %p196 = scmp.eq.s32.totalorder %s38, 1
      %p197 = por %p195, %p196
      %p199 = scmp.ne.s32.totalorder %s184, %s198
      %p200 = scmp.eq.s32.totalorder %s38, 0
      %p201 = por %p199, %p200
      %s203 = sadd.s32 %s202, 1
      %p206 = scmp.eq.s32.totalorder %s32, 1
      %p207 = scmp.ne.s32.totalorder %s202, %s204
      %p208 = scmp.eq.s32.totalorder %s32, 0
      %p209 = por %p207, %p208
      %p210 = scmp.ne.s32.totalorder %s202, %s204
      %p211 = scmp.eq.s32.totalorder %s37, 1
      %p212 = por %p210, %p211
      %p213 = scmp.ne.s32.totalorder %s204, %s205
      %p214 = scmp.eq.s32.totalorder %s37, 0
      %p215 = por %p213, %p214
      %p216 = scmp.ne.s32.totalorder %s204, %s205
      %p217 = scmp.eq.s32.totalorder %s38, 1
      %p218 = por %p216, %p217
      %p220 = scmp.ne.s32.totalorder %s205, %s219
      %p221 = scmp.eq.s32.totalorder %s38, 0
      %p222 = por %p220, %p221
      %s224 = sadd.s32 %s223, 1
      %p227 = scmp.eq.s32.totalorder %s32, 1
      %p228 = scmp.ne.s32.totalorder %s223, %s225
      %p229 = scmp.eq.s32.totalorder %s32, 0
      %p230 = por %p228, %p229
      %p231 = scmp.ne.s32.totalorder %s223, %s225
      %p232 = scmp.eq.s32.totalorder %s37, 1
      %p233 = por %p231, %p232
      %p234 = scmp.ne.s32.totalorder %s225, %s226
      %p235 = scmp.eq.s32.totalorder %s37, 0
      %p236 = por %p234, %p235
      %p237 = scmp.ne.s32.totalorder %s225, %s226
      %p238 = scmp.eq.s32.totalorder %s38, 1
      %p239 = por %p237, %p238
      %p241 = scmp.ne.s32.totalorder %s226, %s240
      %p242 = scmp.eq.s32.totalorder %s38, 0
      %p243 = por %p241, %p242
      %s244 = ssub.s32 %s32, %s39
      %p245 = scmp.eq.s32.totalorder %s244, 0
      %s247 = sadd.s32 %s246, 1
      %s248 = scalar_select %p245, %s246, %s247
      %p251 = pneg %p245
      %p252 = scmp.eq.s32.totalorder %s32, 1
      %p253 = por %p251, %p252
      %p254 = scmp.ne.s32.totalorder %s246, %s249
      %p255 = scmp.eq.s32.totalorder %s32, 0
      %p256 = por %p254, %p255
      %p257 = scmp.ne.s32.totalorder %s246, %s249
      %p258 = scmp.eq.s32.totalorder %s37, 1
      %p259 = por %p257, %p258
      %p260 = scmp.ne.s32.totalorder %s249, %s250
      %p261 = scmp.eq.s32.totalorder %s37, 0
      %p262 = por %p260, %p261
      %p263 = scmp.ne.s32.totalorder %s249, %s250
      %p264 = scmp.eq.s32.totalorder %s38, 1
      %p265 = por %p263, %p264
      %p267 = scmp.ne.s32.totalorder %s250, %s266
      %p268 = scmp.eq.s32.totalorder %s38, 0
      %p269 = por %p267, %p268
      %s270 = ssub.s32 %s32, %s39
      %p271 = scmp.eq.s32.totalorder %s270, 0
      %s273 = sadd.s32 %s272, 1
      %s274 = scalar_select %p271, %s272, %s273
      %p277 = pneg %p271
      %p278 = scmp.eq.s32.totalorder %s32, 1
      %p279 = por %p277, %p278
      %p280 = scmp.ne.s32.totalorder %s272, %s275
      %p281 = scmp.eq.s32.totalorder %s32, 0
      %p282 = por %p280, %p281
      %p283 = scmp.ne.s32.totalorder %s272, %s275
      %p284 = scmp.eq.s32.totalorder %s37, 1
      %p285 = por %p283, %p284
      %p286 = scmp.ne.s32.totalorder %s275, %s276
      %p287 = scmp.eq.s32.totalorder %s37, 0
      %p288 = por %p286, %p287
      %p289 = scmp.ne.s32.totalorder %s275, %s276
      %p290 = scmp.eq.s32.totalorder %s38, 1
      %p291 = por %p289, %p290
      %p293 = scmp.ne.s32.totalorder %s276, %s292
      %p294 = scmp.eq.s32.totalorder %s38, 0
      %p295 = por %p293, %p294
      %s296 = ssub.s32 %s32, %s39
      %p297 = scmp.eq.s32.totalorder %s296, 0
      %s299 = sadd.s32 %s298, 1
      %s300 = scalar_select %p297, %s298, %s299
      %p303 = pneg %p297
      %p304 = scmp.eq.s32.totalorder %s32, 1
      %p305 = por %p303, %p304
      %p306 = scmp.ne.s32.totalorder %s298, %s301
      %p307 = scmp.eq.s32.totalorder %s32, 0
      %p308 = por %p306, %p307
      %p309 = scmp.ne.s32.totalorder %s298, %s301
      %p310 = scmp.eq.s32.totalorder %s37, 1
      %p311 = por %p309, %p310
      %p312 = scmp.ne.s32.totalorder %s301, %s302
      %p313 = scmp.eq.s32.totalorder %s37, 0
      %p314 = por %p312, %p313
      %p315 = scmp.ne.s32.totalorder %s301, %s302
      %p316 = scmp.eq.s32.totalorder %s38, 1
      %p317 = por %p315, %p316
      %p319 = scmp.ne.s32.totalorder %s302, %s318
      %p320 = scmp.eq.s32.totalorder %s38, 0
      %p321 = por %p319, %p320
      %p322 = scmp.le.s32.totalorder 1, %s32
      %p323 = scmp.lt.s32.totalorder %s32, 3
      %p324 = pnand %p322, %p323
      %p325 = pneg %p324
      // Predicated region
      $region9: #{tpu_custom_call.1} parent=5 // pred_check
        _
      $region10: #{tpu_custom_call.1} parent=5 // pred_check_branch
        %327 = sbr.rel (%p324) target = $region12
      $region11: #{tpu_custom_call.1} parent=5 // pred_region
        %s328 = ssub.s32 %s32, 1
        // Predicated region
        $region13: #{tpu_custom_call.1} parent=11 // pred_check
          %p329 = pneg %p131
        $region14: #{tpu_custom_call.1} parent=11 // pred_check_branch
          %331 = sbr.rel (%p329) target = $region16
        $region15: #{tpu_custom_call.1} parent=11 // pred_region
          %s333 = ssub.s32 512, 512
          %334 = vsyncadd [#allocation9], %s333
          %s335 = sshll.u32 [#allocation8], 4
          %s336 = int_to_ptr.vmem [resolvable:$true] %s335
          %341 = dma.hbm_to_vmem [thread:$0]  %s3, 512, %s336, [#allocation9], 128, 128, 8
        $region16: #{tpu_custom_call.1} parent=11 // pred_fallthru
          _
        // Predicated region
        $region17: #{tpu_custom_call.1} parent=11 // pred_check
          %p342 = pneg %p152
        $region18: #{tpu_custom_call.1} parent=11 // pred_check_branch
          %344 = sbr.rel (%p342) target = $region20
        $region19: #{tpu_custom_call.1} parent=11 // pred_region
          _
        $region20: #{tpu_custom_call.1} parent=11 // pred_fallthru
          _
        // Predicated region
        $region21: #{tpu_custom_call.1} parent=11 // pred_check
          %p345 = pneg %p173
        $region22: #{tpu_custom_call.1} parent=11 // pred_check_branch
          %347 = sbr.rel (%p345) target = $region24
        $region23: #{tpu_custom_call.1} parent=11 // pred_region
          %s349 = ssub.s32 512, 512
          %350 = vsyncadd [#allocation9], %s349
          %s351 = sshll.u32 [#allocation10], 4
          %s352 = int_to_ptr.vmem [resolvable:$true] %s351
          %357 = dma.hbm_to_vmem [thread:$0]  %s5, 512, %s352, [#allocation9], 128, 128, 8
        $region24: #{tpu_custom_call.1} parent=11 // pred_fallthru
          _
        // Predicated region
        $region25: #{tpu_custom_call.1} parent=11 // pred_check
          %p358 = pneg %p194
        $region26: #{tpu_custom_call.1} parent=11 // pred_check_branch
          %360 = sbr.rel (%p358) target = $region28
        $region27: #{tpu_custom_call.1} parent=11 // pred_region
          _
        $region28: #{tpu_custom_call.1} parent=11 // pred_fallthru
          _
        // Predicated region
        $region29: #{tpu_custom_call.1} parent=11 // pred_check
          %p361 = pneg %p215
        $region30: #{tpu_custom_call.1} parent=11 // pred_check_branch
          %363 = sbr.rel (%p361) target = $region32
        $region31: #{tpu_custom_call.1} parent=11 // pred_region
          %s365 = ssub.s32 512, 512
          %366 = vsyncadd [#allocation12], %s365
          %s367 = sshll.u32 [#allocation11], 4
          %s368 = int_to_ptr.vmem [resolvable:$true] %s367
          %373 = dma.hbm_to_vmem [thread:$0]  %s7, 512, %s368, [#allocation12], 128, 128, 8
        $region32: #{tpu_custom_call.1} parent=11 // pred_fallthru
          _
        // Predicated region
        $region33: #{tpu_custom_call.1} parent=11 // pred_check
          %p374 = pneg %p236
        $region34: #{tpu_custom_call.1} parent=11 // pred_check_branch
          %376 = sbr.rel (%p374) target = $region36
        $region35: #{tpu_custom_call.1} parent=11 // pred_region
          _
        $region36: #{tpu_custom_call.1} parent=11 // pred_fallthru
          _
      $region12: #{tpu_custom_call.1} parent=5 // pred_fallthru
        _
      %p377 = scmp.lt.s32.totalorder %s32, 2
      // Predicated region
      $region37: #{tpu_custom_call.1} parent=5 // pred_check
        %p378 = pneg %p377
      $region38: #{tpu_custom_call.1} parent=5 // pred_check_branch
        %380 = sbr.rel (%p378) target = $region40
      $region39: #{tpu_custom_call.1} parent=5 // pred_region
        // Predicated region
        $region41: #{tpu_custom_call.1} parent=39 // pred_check
          %p381 = pneg %p52
        $region42: #{tpu_custom_call.1} parent=39 // pred_check_branch
          %383 = sbr.rel (%p381) target = $region44
        $region43: #{tpu_custom_call.1} parent=39 // pred_region
          %s384 = sand.u32 %s42, 1
          %s385 = scalar_lea.sflag [#allocation3], %s384
          %s386 = sand.u32 %s42, 1
          %s387 = smul.addr %s386, 8
          %s388 = scalar_lea.vmem [#allocation2], %s387
          %s390 = ssub.s32 128, 128
          %391 = vsyncadd %s385, %s390
          %s392 = smul.addr %s32, 128
          %s393 = scalar_lea.hbm %s0, %s392
          %s395 = sshll.u32 %s388, 4
          %s396 = int_to_ptr.vmem [resolvable:$true] %s395
          %398 = dma.hbm_to_vmem [thread:$0]  %s393, 128, %s396, %s385
        $region44: #{tpu_custom_call.1} parent=39 // pred_fallthru
          _
        // Predicated region
        $region45: #{tpu_custom_call.1} parent=39 // pred_check
          %p399 = pneg %p78
        $region46: #{tpu_custom_call.1} parent=39 // pred_check_branch
          %401 = sbr.rel (%p399) target = $region48
        $region47: #{tpu_custom_call.1} parent=39 // pred_region
          %s402 = sand.u32 %s32, 1
          %s403 = scalar_lea.sflag [#allocation6], %s402
          %s404 = sand.u32 %s68, 1
          %s405 = smul.addr %s404, 8
          %s406 = scalar_lea.vmem [#allocation5], %s405
          %s408 = ssub.s32 128, 128
          %409 = vsyncadd %s403, %s408
          %s410 = smul.addr %s32, 128
          %s411 = scalar_lea.hbm %s1, %s410
          %s413 = sshll.u32 %s406, 4
          %s414 = int_to_ptr.vmem [resolvable:$true] %s413
          %416 = dma.hbm_to_vmem [thread:$0]  %s411, 128, %s414, %s403
        $region48: #{tpu_custom_call.1} parent=39 // pred_fallthru
          _
        // Predicated region
        $region49: #{tpu_custom_call.1} parent=39 // pred_check
          %p417 = pneg %p104
        $region50: #{tpu_custom_call.1} parent=39 // pred_check_branch
          %419 = sbr.rel (%p417) target = $region52
        $region51: #{tpu_custom_call.1} parent=39 // pred_region
          %s420 = sand.u32 %s32, 1
          %s421 = scalar_lea.sflag [#allocation6], %s420
          %s422 = sand.u32 %s94, 1
          %s423 = smul.addr %s422, 8
          %s424 = scalar_lea.vmem [#allocation7], %s423
          %s426 = ssub.s32 128, 128
          %427 = vsyncadd %s421, %s426
          %s428 = smul.addr %s32, 128
          %s429 = scalar_lea.hbm %s2, %s428
          %s431 = sshll.u32 %s424, 4
          %s432 = int_to_ptr.vmem [resolvable:$true] %s431
          %434 = dma.hbm_to_vmem [thread:$0]  %s429, 128, %s432, %s421
        $region52: #{tpu_custom_call.1} parent=39 // pred_fallthru
          _
        // Predicated region
        $region53: #{tpu_custom_call.1} parent=39 // pred_check
          %p435 = pneg %p256
        $region54: #{tpu_custom_call.1} parent=39 // pred_check_branch
          %437 = sbr.rel (%p435) target = $region56
        $region55: #{tpu_custom_call.1} parent=39 // pred_region
          %p438 = scmp.lt.s32.totalorder %s32, 1
          %s439 = scalar_select %p438, %s32, 1
          %s440 = scalar_lea.vmem %s9, %s439
        $region56: #{tpu_custom_call.1} parent=39 // pred_fallthru
          _
      $region40: #{tpu_custom_call.1} parent=5 // pred_fallthru
        _
      %p441 = scmp.le.s32.totalorder 1, %s32
      %p442 = scmp.lt.s32.totalorder %s32, 3
      %p443 = pnand %p441, %p442
      %p444 = pneg %p443
      // Predicated region
      $region57: #{tpu_custom_call.1} parent=5 // pred_check
        _
      $region58: #{tpu_custom_call.1} parent=5 // pred_check_branch
        %446 = sbr.rel (%p443) target = $region60
      $region59: #{tpu_custom_call.1} parent=5 // pred_region
        %s447 = ssub.s32 %s32, 1
        %s448 = sand.u32 %s45, 1
        %s449 = scalar_lea.sflag [#allocation3], %s448
        %s450 = sand.u32 %s45, 1
        %s451 = smul.addr %s450, 8
        %s452 = scalar_lea.vmem [#allocation2], %s451
        // Predicated region
        $region61: #{tpu_custom_call.1} parent=59 // pred_check
          %p453 = pneg %p58
        $region62: #{tpu_custom_call.1} parent=59 // pred_check_branch
          %455 = sbr.rel (%p453) target = $region64
        $region63: #{tpu_custom_call.1} parent=59 // pred_region
          %456 = dma.done %s449, 128
        $region64: #{tpu_custom_call.1} parent=59 // pred_fallthru
          _
        %s457 = sand.u32 %s37, 1
        %s458 = scalar_lea.sflag [#allocation6], %s457
        %s459 = sand.u32 %s71, 1
        %s460 = smul.addr %s459, 8
        %s461 = scalar_lea.vmem [#allocation5], %s460
        // Predicated region
        $region65: #{tpu_custom_call.1} parent=59 // pred_check
          %p462 = pneg %p84
        $region66: #{tpu_custom_call.1} parent=59 // pred_check_branch
          %464 = sbr.rel (%p462) target = $region68
        $region67: #{tpu_custom_call.1} parent=59 // pred_region
          %465 = dma.done %s458, 128
        $region68: #{tpu_custom_call.1} parent=59 // pred_fallthru
          _
        %s466 = sand.u32 %s37, 1
        %s467 = scalar_lea.sflag [#allocation6], %s466
        %s468 = sand.u32 %s97, 1
        %s469 = smul.addr %s468, 8
        %s470 = scalar_lea.vmem [#allocation7], %s469
        // Predicated region
        $region69: #{tpu_custom_call.1} parent=59 // pred_check
          %p471 = pneg %p110
        $region70: #{tpu_custom_call.1} parent=59 // pred_check_branch
          %473 = sbr.rel (%p471) target = $region72
        $region71: #{tpu_custom_call.1} parent=59 // pred_region
          %474 = dma.done %s467, 128
        $region72: #{tpu_custom_call.1} parent=59 // pred_fallthru
          _
        // Predicated region
        $region73: #{tpu_custom_call.1} parent=59 // pred_check
          %p475 = pneg %p131
        $region74: #{tpu_custom_call.1} parent=59 // pred_check_branch
          %477 = sbr.rel (%p475) target = $region76
        $region75: #{tpu_custom_call.1} parent=59 // pred_region
          %478 = dma.done [#allocation9], 512
        $region76: #{tpu_custom_call.1} parent=59 // pred_fallthru
          _
        // Predicated region
        $region77: #{tpu_custom_call.1} parent=59 // pred_check
          %p479 = pneg %p173
        $region78: #{tpu_custom_call.1} parent=59 // pred_check_branch
          %481 = sbr.rel (%p479) target = $region80
        $region79: #{tpu_custom_call.1} parent=59 // pred_region
          %482 = dma.done [#allocation9], 512
        $region80: #{tpu_custom_call.1} parent=59 // pred_fallthru
          _
        // Predicated region
        $region81: #{tpu_custom_call.1} parent=59 // pred_check
          %p483 = pneg %p215
        $region82: #{tpu_custom_call.1} parent=59 // pred_check_branch
          %485 = sbr.rel (%p483) target = $region84
        $region83: #{tpu_custom_call.1} parent=59 // pred_region
          %486 = dma.done [#allocation12], 512
        $region84: #{tpu_custom_call.1} parent=59 // pred_fallthru
          _
        %s487 = sand.u32 %s45, 1
        %s488 = scalar_lea.sflag [#allocation3], %s487
        %s489 = sand.u32 %s45, 1
        %s490 = smul.addr %s489, 8
        %s491 = scalar_lea.vmem [#allocation2], %s490
        %p492 = pneg %p58
        %p493 = pneg %p55
        %s494 = sand.u32 %s37, 1
        %s495 = scalar_lea.sflag [#allocation6], %s494
        %s496 = sand.u32 %s71, 1
        %s497 = smul.addr %s496, 8
        %s498 = scalar_lea.vmem [#allocation5], %s497
        %p499 = pneg %p84
        %p500 = pneg %p81
        %s501 = sand.u32 %s37, 1
        %s502 = scalar_lea.sflag [#allocation6], %s501
        %s503 = sand.u32 %s97, 1
        %s504 = smul.addr %s503, 8
        %s505 = scalar_lea.vmem [#allocation7], %s504
        %p506 = pneg %p110
        %p507 = pneg %p107
        %p508 = pneg %p131
        %p509 = pneg %p128
        %p510 = pneg %p152
        %p511 = pneg %p149
        %p512 = pneg %p173
        %p513 = pneg %p170
        %p514 = pneg %p194
        %p515 = pneg %p191
        %p516 = pneg %p215
        %p517 = pneg %p212
        %p518 = pneg %p236
        %p519 = pneg %p233
        %p520 = scmp.lt.s32.totalorder %s37, 1
        %s521 = scalar_select %p520, %s37, 1
        %s522 = scalar_lea.vmem %s9, %s521
        %p523 = pneg %p262
        %p524 = pneg %p259
        %p525 = pneg %p288
        %p526 = pneg %p285
        %s527 = sand.u32 %s275, 1
        %s528 = scalar_lea.sflag [#allocation4], %s527
        %s529 = sand.u32 %s275, 1
        %s530 = smul.addr %s529, 8
        %s531 = scalar_lea.vmem [#allocation13], %s530
        %p532 = pneg %p314
        %p533 = pneg %p311
        %s534 = sand.u32 %s301, 1
        %s535 = scalar_lea.sflag [#allocation15], %s534
        %s536 = sand.u32 %s301, 1
        %s537 = smul.addr %s536, 32
        %s538 = scalar_lea.vmem [#allocation14], %s537
        %p539 = scmp.lt.s32.totalorder %s37, 1
        %s540 = scalar_select %p539, %s37, 1
        %s541 = scalar_lea.vmem %s9, %s540
        %v542 = vld [vmem:[%s452] sm:$0xff]
        %v543 = vld [vmem:[#allocation8] sm:$0xff]
        %v544 = vld [vmem:[#allocation8 + $0x8] sm:$0xff]
        %v545 = vld [vmem:[#allocation8 + $0x10] sm:$0xff]
        %v546 = vld [vmem:[#allocation8 + $0x18] sm:$0xff]
        %v547 = vld [vmem:[%s4] sm:$0x1]
        %v549 = vlaneseq
        %v550 = vshrl.u32 %v549, 7
        %v551 = vsub.s32 0, %v550
        %v552 = vrot.slane %v547, %v551
        %vm554 = vcmask 261120
        %v556 = vsel %vm554, %v542, 0
        %558 = vmatprep.subr.mxu0 0.0
        %559 = vmatpush1.msra.mxu0 0.0
        %560 = vmatprep.subr.mxu0 0.0
        %561 = vmatpush1.msra.mxu0 0.0
        %562 = vmatprep.subr.mxu0 0.0
        %563 = vmatpush1.msra.mxu0 0.0
        %564 = vmatprep.subr.mxu0 0.0
        %565 = vmatpush1.msra.mxu0 0.0
        %566 = vmatprep.subr.mxu0 0.0
        %567 = vmatpush1.msra.mxu0 0.0
        %568 = vmatprep.subr.mxu0 0.0
        %569 = vmatpush1.msra.mxu0 0.0
        %570 = vmatprep.subr.mxu0 0.0
        %571 = vmatpush1.msra.mxu0 0.0
        %572 = vmatprep.subr.mxu0 0.0
        %573 = vmatpush1.msra.mxu0 0.0
        %574 = vmatprep.subr.mxu0 0.0
        %575 = vmatpush1.msra.mxu0 0.0
        %576 = vmatprep.subr.mxu0 0.0
        %577 = vmatpush1.msra.mxu0 0.0
        %578 = vmatprep.subr.mxu0 0.0
        %579 = vmatpush1.msra.mxu0 0.0
        %580 = vmatprep.subr.mxu0 0.0
        %581 = vmatpush1.msra.mxu0 0.0
        %582 = vmatprep.subr.mxu0 0.0
        %583 = vmatpush1.msra.mxu0 %v546
        %584 = vmatprep.subr.mxu0 0.0
        %585 = vmatpush1.msra.mxu0 %v545
        %586 = vmatprep.subr.mxu0 0.0
        %587 = vmatpush1.msra.mxu0 %v544
        %588 = vmatprep.subr.mxu0 0.0
        %589 = vmatpush1.msra.mxu0 %v543
        %590 = vmatprep.subr.mxu0 0.0
        %591 = vmatpush2.msra.mxu0 0.0
        %592 = vmatprep.subr.mxu0 0.0
        %593 = vmatpush2.msra.mxu0 0.0
        %594 = vmatprep.subr.mxu0 0.0
        %595 = vmatpush2.msra.mxu0 0.0
        %596 = vmatprep.subr.mxu0 0.0
        %597 = vmatpush2.msra.mxu0 0.0
        %598 = vmatprep.subr.mxu0 0.0
        %599 = vmatpush2.msra.mxu0 0.0
        %600 = vmatprep.subr.mxu0 0.0
        %601 = vmatpush2.msra.mxu0 0.0
        %602 = vmatprep.subr.mxu0 0.0
        %603 = vmatpush2.msra.mxu0 0.0
        %604 = vmatprep.subr.mxu0 0.0
        %605 = vmatpush2.msra.mxu0 0.0
        %606 = vmatprep.subr.mxu0 0.0
        %607 = vmatpush2.msra.mxu0 0.0
        %608 = vmatprep.subr.mxu0 0.0
        %609 = vmatpush2.msra.mxu0 0.0
        %610 = vmatprep.subr.mxu0 0.0
        %611 = vmatpush2.msra.mxu0 0.0
        %612 = vmatprep.subr.mxu0 0.0
        %613 = vmatpush2.msra.mxu0 0.0
        %614 = vmatprep.subr.mxu0 0.0
        %615 = vmatpush2.msra.mxu0 0.0
        %616 = vmatprep.subr.mxu0 0.0
        %617 = vmatpush2.msra.mxu0 0.0
        %618 = vmatprep.subr.mxu0 0.0
        %619 = vmatpush2.msra.mxu0 0.0
        %620 = vmatprep.subr.mxu0 0.0
        %621 = vmatpush2.msra.mxu0 0.0
        %622 = vmatprep.mubr.f32.mxu0 0.0
        %623 = vmatmul.mubr.f32.gmra.mxu0 %v556
        %v624 = vpop.f32.mrf.mxu0
        %v625 = vadd.f32 %v552, %v624
        %v626 = vpop.f32.mrf.mxu0
        %627 = vdwg.mxu0
        %v628 = vld [vmem:[%s461] sm:$0xff]
        %v629 = vld [vmem:[#allocation10] sm:$0xff]
        %v630 = vld [vmem:[#allocation10 + $0x8] sm:$0xff]
        %v631 = vld [vmem:[#allocation10 + $0x10] sm:$0xff]
        %v632 = vld [vmem:[#allocation10 + $0x18] sm:$0xff]
        %v633 = vld [vmem:[%s6] sm:$0x1]
        %v635 = vlaneseq
        %v636 = vshrl.u32 %v635, 7
        %v637 = vsub.s32 0, %v636
        %v638 = vrot.slane %v633, %v637
        %v641 = vsel %vm554, %v628, 0
        %643 = vmatprep.subr.mxu0 0.0
        %644 = vmatpush1.msra.mxu0 0.0
        %645 = vmatprep.subr.mxu0 0.0
        %646 = vmatpush1.msra.mxu0 0.0
        %647 = vmatprep.subr.mxu0 0.0
        %648 = vmatpush1.msra.mxu0 0.0
        %649 = vmatprep.subr.mxu0 0.0
        %650 = vmatpush1.msra.mxu0 0.0
        %651 = vmatprep.subr.mxu0 0.0
        %652 = vmatpush1.msra.mxu0 0.0
        %653 = vmatprep.subr.mxu0 0.0
        %654 = vmatpush1.msra.mxu0 0.0
        %655 = vmatprep.subr.mxu0 0.0
        %656 = vmatpush1.msra.mxu0 0.0
        %657 = vmatprep.subr.mxu0 0.0
        %658 = vmatpush1.msra.mxu0 0.0
        %659 = vmatprep.subr.mxu0 0.0
        %660 = vmatpush1.msra.mxu0 0.0
        %661 = vmatprep.subr.mxu0 0.0
        %662 = vmatpush1.msra.mxu0 0.0
        %663 = vmatprep.subr.mxu0 0.0
        %664 = vmatpush1.msra.mxu0 0.0
        %665 = vmatprep.subr.mxu0 0.0
        %666 = vmatpush1.msra.mxu0 0.0
        %667 = vmatprep.subr.mxu0 0.0
        %668 = vmatpush1.msra.mxu0 %v632
        %669 = vmatprep.subr.mxu0 0.0
        %670 = vmatpush1.msra.mxu0 %v631
        %671 = vmatprep.subr.mxu0 0.0
        %672 = vmatpush1.msra.mxu0 %v630
        %673 = vmatprep.subr.mxu0 0.0
        %674 = vmatpush1.msra.mxu0 %v629
        %675 = vmatprep.subr.mxu0 0.0
        %676 = vmatpush2.msra.mxu0 0.0
        %677 = vmatprep.subr.mxu0 0.0
        %678 = vmatpush2.msra.mxu0 0.0
        %679 = vmatprep.subr.mxu0 0.0
        %680 = vmatpush2.msra.mxu0 0.0
        %681 = vmatprep.subr.mxu0 0.0
        %682 = vmatpush2.msra.mxu0 0.0
        %683 = vmatprep.subr.mxu0 0.0
        %684 = vmatpush2.msra.mxu0 0.0
        %685 = vmatprep.subr.mxu0 0.0
        %686 = vmatpush2.msra.mxu0 0.0
        %687 = vmatprep.subr.mxu0 0.0
        %688 = vmatpush2.msra.mxu0 0.0
        %689 = vmatprep.subr.mxu0 0.0
        %690 = vmatpush2.msra.mxu0 0.0
        %691 = vmatprep.subr.mxu0 0.0
        %692 = vmatpush2.msra.mxu0 0.0
        %693 = vmatprep.subr.mxu0 0.0
        %694 = vmatpush2.msra.mxu0 0.0
        %695 = vmatprep.subr.mxu0 0.0
        %696 = vmatpush2.msra.mxu0 0.0
        %697 = vmatprep.subr.mxu0 0.0
        %698 = vmatpush2.msra.mxu0 0.0
        %699 = vmatprep.subr.mxu0 0.0
        %700 = vmatpush2.msra.mxu0 0.0
        %701 = vmatprep.subr.mxu0 0.0
        %702 = vmatpush2.msra.mxu0 0.0
        %703 = vmatprep.subr.mxu0 0.0
        %704 = vmatpush2.msra.mxu0 0.0
        %705 = vmatprep.subr.mxu0 0.0
        %706 = vmatpush2.msra.mxu0 0.0
        %707 = vmatprep.mubr.f32.mxu0 0.0
        %708 = vmatmul.mubr.f32.gmra.mxu0 %v641
        %v709 = vpop.f32.mrf.mxu0
        %v710 = vadd.f32 %v638, %v709
        %v711 = vpop.f32.mrf.mxu0
        %712 = vdwg.mxu0
        %v713 = vld [vmem:[%s470] sm:$0xff]
        %v714 = vld [vmem:[#allocation11] sm:$0xff]
        %v715 = vld [vmem:[#allocation11 + $0x8] sm:$0xff]
        %v716 = vld [vmem:[#allocation11 + $0x10] sm:$0xff]
        %v717 = vld [vmem:[#allocation11 + $0x18] sm:$0xff]
        %v718 = vld [vmem:[%s8] sm:$0x1]
        %v720 = vlaneseq
        %v721 = vshrl.u32 %v720, 7
        %v722 = vsub.s32 0, %v721
        %v723 = vrot.slane %v718, %v722
        %v726 = vsel %vm554, %v713, 0
        %728 = vmatprep.subr.mxu0 0.0
        %729 = vmatpush1.msra.mxu0 0.0
        %730 = vmatprep.subr.mxu0 0.0
        %731 = vmatpush1.msra.mxu0 0.0
        %732 = vmatprep.subr.mxu0 0.0
        %733 = vmatpush1.msra.mxu0 0.0
        %734 = vmatprep.subr.mxu0 0.0
        %735 = vmatpush1.msra.mxu0 0.0
        %736 = vmatprep.subr.mxu0 0.0
        %737 = vmatpush1.msra.mxu0 0.0
        %738 = vmatprep.subr.mxu0 0.0
        %739 = vmatpush1.msra.mxu0 0.0
        %740 = vmatprep.subr.mxu0 0.0
        %741 = vmatpush1.msra.mxu0 0.0
        %742 = vmatprep.subr.mxu0 0.0
        %743 = vmatpush1.msra.mxu0 0.0
        %744 = vmatprep.subr.mxu0 0.0
        %745 = vmatpush1.msra.mxu0 0.0
        %746 = vmatprep.subr.mxu0 0.0
        %747 = vmatpush1.msra.mxu0 0.0
        %748 = vmatprep.subr.mxu0 0.0
        %749 = vmatpush1.msra.mxu0 0.0
        %750 = vmatprep.subr.mxu0 0.0
        %751 = vmatpush1.msra.mxu0 0.0
        %752 = vmatprep.subr.mxu0 0.0
        %753 = vmatpush1.msra.mxu0 %v717
        %754 = vmatprep.subr.mxu0 0.0
        %755 = vmatpush1.msra.mxu0 %v716
        %756 = vmatprep.subr.mxu0 0.0
        %757 = vmatpush1.msra.mxu0 %v715
        %758 = vmatprep.subr.mxu0 0.0
        %759 = vmatpush1.msra.mxu0 %v714
        %760 = vmatprep.subr.mxu0 0.0
        %761 = vmatpush2.msra.mxu0 0.0
        %762 = vmatprep.subr.mxu0 0.0
        %763 = vmatpush2.msra.mxu0 0.0
        %764 = vmatprep.subr.mxu0 0.0
        %765 = vmatpush2.msra.mxu0 0.0
        %766 = vmatprep.subr.mxu0 0.0
        %767 = vmatpush2.msra.mxu0 0.0
        %768 = vmatprep.subr.mxu0 0.0
        %769 = vmatpush2.msra.mxu0 0.0
        %770 = vmatprep.subr.mxu0 0.0
        %771 = vmatpush2.msra.mxu0 0.0
        %772 = vmatprep.subr.mxu0 0.0
        %773 = vmatpush2.msra.mxu0 0.0
        %774 = vmatprep.subr.mxu0 0.0
        %775 = vmatpush2.msra.mxu0 0.0
        %776 = vmatprep.subr.mxu0 0.0
        %777 = vmatpush2.msra.mxu0 0.0
        %778 = vmatprep.subr.mxu0 0.0
        %779 = vmatpush2.msra.mxu0 0.0
        %780 = vmatprep.subr.mxu0 0.0
        %781 = vmatpush2.msra.mxu0 0.0
        %782 = vmatprep.subr.mxu0 0.0
        %783 = vmatpush2.msra.mxu0 0.0
        %784 = vmatprep.subr.mxu0 0.0
        %785 = vmatpush2.msra.mxu0 0.0
        %786 = vmatprep.subr.mxu0 0.0
        %787 = vmatpush2.msra.mxu0 0.0
        %788 = vmatprep.subr.mxu0 0.0
        %789 = vmatpush2.msra.mxu0 0.0
        %790 = vmatprep.subr.mxu0 0.0
        %791 = vmatpush2.msra.mxu0 0.0
        %792 = vmatprep.mubr.f32.mxu0 0.0
        %793 = vmatmul.mubr.f32.gmra.mxu0 %v726
        %v794 = vpop.f32.mrf.mxu0
        %v795 = vadd.f32 %v723, %v794
        %v796 = vpop.f32.mrf.mxu0
        %797 = vdwg.mxu0
        %v798 = vld [vmem:[%s541] sm:$0x1]
        %vm799 = vcmask 64512
        %v801 = vsel %vm799, %v625, 0
        %v804 = vsel %vm799, %v710, 0
        %806 = vmatprep.subr.mxu0 0.0
        %807 = vmatpush1.xpose.msra.mxu0 0.0
        %808 = vmatprep.subr.mxu0 0.0
        %809 = vmatpush1.xpose.msra.mxu0 0.0
        %810 = vmatprep.subr.mxu0 0.0
        %811 = vmatpush1.xpose.msra.mxu0 0.0
        %812 = vmatprep.subr.mxu0 0.0
        %813 = vmatpush1.xpose.msra.mxu0 0.0
        %814 = vmatprep.subr.mxu0 0.0
        %815 = vmatpush1.xpose.msra.mxu0 0.0
        %816 = vmatprep.subr.mxu0 0.0
        %817 = vmatpush1.xpose.msra.mxu0 0.0
        %818 = vmatprep.subr.mxu0 0.0
        %819 = vmatpush1.xpose.msra.mxu0 0.0
        %820 = vmatprep.subr.mxu0 0.0
        %821 = vmatpush1.xpose.msra.mxu0 0.0
        %822 = vmatprep.subr.mxu0 0.0
        %823 = vmatpush1.xpose.msra.mxu0 0.0
        %824 = vmatprep.subr.mxu0 0.0
        %825 = vmatpush1.xpose.msra.mxu0 0.0
        %826 = vmatprep.subr.mxu0 0.0
        %827 = vmatpush1.xpose.msra.mxu0 0.0
        %828 = vmatprep.subr.mxu0 0.0
        %829 = vmatpush1.xpose.msra.mxu0 0.0
        %830 = vmatprep.subr.mxu0 0.0
        %831 = vmatpush1.xpose.msra.mxu0 0.0
        %832 = vmatprep.subr.mxu0 0.0
        %833 = vmatpush1.xpose.msra.mxu0 0.0
        %834 = vmatprep.subr.mxu0 0.0
        %835 = vmatpush1.xpose.msra.mxu0 0.0
        %836 = vmatprep.subr.mxu0 0.0
        %837 = vmatpush1.xpose.msra.mxu0 %v804
        %838 = vmatprep.subr.mxu0 0.0
        %839 = vmatpush2.xpose.msra.mxu0 0.0
        %840 = vmatprep.subr.mxu0 0.0
        %841 = vmatpush2.xpose.msra.mxu0 0.0
        %842 = vmatprep.subr.mxu0 0.0
        %843 = vmatpush2.xpose.msra.mxu0 0.0
        %844 = vmatprep.subr.mxu0 0.0
        %845 = vmatpush2.xpose.msra.mxu0 0.0
        %846 = vmatprep.subr.mxu0 0.0
        %847 = vmatpush2.xpose.msra.mxu0 0.0
        %848 = vmatprep.subr.mxu0 0.0
        %849 = vmatpush2.xpose.msra.mxu0 0.0
        %850 = vmatprep.subr.mxu0 0.0
        %851 = vmatpush2.xpose.msra.mxu0 0.0
        %852 = vmatprep.subr.mxu0 0.0
        %853 = vmatpush2.xpose.msra.mxu0 0.0
        %854 = vmatprep.subr.mxu0 0.0
        %855 = vmatpush2.xpose.msra.mxu0 0.0
        %856 = vmatprep.subr.mxu0 0.0
        %857 = vmatpush2.xpose.msra.mxu0 0.0
        %858 = vmatprep.subr.mxu0 0.0
        %859 = vmatpush2.xpose.msra.mxu0 0.0
        %860 = vmatprep.subr.mxu0 0.0
        %861 = vmatpush2.xpose.msra.mxu0 0.0
        %862 = vmatprep.subr.mxu0 0.0
        %863 = vmatpush2.xpose.msra.mxu0 0.0
        %864 = vmatprep.subr.mxu0 0.0
        %865 = vmatpush2.xpose.msra.mxu0 0.0
        %866 = vmatprep.subr.mxu0 0.0
        %867 = vmatpush2.xpose.msra.mxu0 0.0
        %868 = vmatprep.subr.mxu0 0.0
        %869 = vmatpush2.xpose.msra.mxu0 0.0
        %870 = vmatprep.mubr.f32.mxu0 0.0
        %871 = vmatmul.mubr.f32.gmra.mxu0 %v801
        %v872 = vpop.f32.mrf.mxu0
        %v873 = vadd.f32 0.0, %v872
        %v874 = vpop.f32.mrf.mxu0
        %875 = vdwg.mxu0
        %v876 = vmul.f32 %v873, 0.35355338
        %vm877 = vcmp.ne.s32.totalorder %v798, 0
        %v878 = vsel %vm877, 1, 0
        %v879 = vlaneseq
        %v880 = vshrl.u32 %v879, 7
        %v881 = vsub.s32 0, %v880
        %v882 = vrot.slane %v878, %v881
        %vm883 = vcmp.eq.s32.totalorder %v882, 1
        %v884 = vsel %vm883, -1e+09, %v876
        %v885 = vsel %vm799, %v884, -inf
        %886 = vmax.xlane.f32.xlu0 %v885
        %v887 = vpop.xlane.xlu0 %886
        %v888 = vsub.f32 %v884, %v887
        %v889 = vmul.f32 %v888, 1.442695
        %v890 = vpow.pop %v889
        %v891 = vsel %vm799, %v890, 0.0
        %892 = vadd.xlane.f32.xlu0 %v891
        %v893 = vpop.xlane.xlu0 %892
        %v894 = vrcp.pop %v893
        %v895 = vmul.f32 %v890, %v894
        %896 = vst.msk [vmem:[%s538] sm:$0xff] %vm799, %v895
        %v898 = vsel %vm799, %v895, 0
        %900 = vmatprep.subr.mxu0 0.0
        %901 = vmatpush1.msra.mxu0 0.0
        %902 = vmatprep.subr.mxu0 0.0
        %903 = vmatpush1.msra.mxu0 0.0
        %904 = vmatprep.subr.mxu0 0.0
        %905 = vmatpush1.msra.mxu0 0.0
        %906 = vmatprep.subr.mxu0 0.0
        %907 = vmatpush1.msra.mxu0 0.0
        %908 = vmatprep.subr.mxu0 0.0
        %909 = vmatpush1.msra.mxu0 0.0
        %910 = vmatprep.subr.mxu0 0.0
        %911 = vmatpush1.msra.mxu0 0.0
        %912 = vmatprep.subr.mxu0 0.0
        %913 = vmatpush1.msra.mxu0 0.0
        %914 = vmatprep.subr.mxu0 0.0
        %915 = vmatpush1.msra.mxu0 0.0
        %916 = vmatprep.subr.mxu0 0.0
        %917 = vmatpush1.msra.mxu0 0.0
        %918 = vmatprep.subr.mxu0 0.0
        %919 = vmatpush1.msra.mxu0 0.0
        %920 = vmatprep.subr.mxu0 0.0
        %921 = vmatpush1.msra.mxu0 0.0
        %922 = vmatprep.subr.mxu0 0.0
        %923 = vmatpush1.msra.mxu0 0.0
        %924 = vmatprep.subr.mxu0 0.0
        %925 = vmatpush1.msra.mxu0 0.0
        %926 = vmatprep.subr.mxu0 0.0
        %927 = vmatpush1.msra.mxu0 0.0
        %928 = vmatprep.subr.mxu0 0.0
        %929 = vmatpush1.msra.mxu0 0.0
        %930 = vmatprep.subr.mxu0 0.0
        %931 = vmatpush1.msra.mxu0 %v795
        %932 = vmatprep.subr.mxu0 0.0
        %933 = vmatpush2.msra.mxu0 0.0
        %934 = vmatprep.subr.mxu0 0.0
        %935 = vmatpush2.msra.mxu0 0.0
        %936 = vmatprep.subr.mxu0 0.0
        %937 = vmatpush2.msra.mxu0 0.0
        %938 = vmatprep.subr.mxu0 0.0
        %939 = vmatpush2.msra.mxu0 0.0
        %940 = vmatprep.subr.mxu0 0.0
        %941 = vmatpush2.msra.mxu0 0.0
        %942 = vmatprep.subr.mxu0 0.0
        %943 = vmatpush2.msra.mxu0 0.0
        %944 = vmatprep.subr.mxu0 0.0
        %945 = vmatpush2.msra.mxu0 0.0
        %946 = vmatprep.subr.mxu0 0.0
        %947 = vmatpush2.msra.mxu0 0.0
        %948 = vmatprep.subr.mxu0 0.0
        %949 = vmatpush2.msra.mxu0 0.0
        %950 = vmatprep.subr.mxu0 0.0
        %951 = vmatpush2.msra.mxu0 0.0
        %952 = vmatprep.subr.mxu0 0.0
        %953 = vmatpush2.msra.mxu0 0.0
        %954 = vmatprep.subr.mxu0 0.0
        %955 = vmatpush2.msra.mxu0 0.0
        %956 = vmatprep.subr.mxu0 0.0
        %957 = vmatpush2.msra.mxu0 0.0
        %958 = vmatprep.subr.mxu0 0.0
        %959 = vmatpush2.msra.mxu0 0.0
        %960 = vmatprep.subr.mxu0 0.0
        %961 = vmatpush2.msra.mxu0 0.0
        %962 = vmatprep.subr.mxu0 0.0
        %963 = vmatpush2.msra.mxu0 0.0
        %964 = vmatprep.mubr.f32.mxu0 0.0
        %965 = vmatmul.mubr.f32.gmra.mxu0 %v898
        %v966 = vpop.f32.mrf.mxu0
        %v967 = vadd.f32 0.0, %v966
        %v968 = vpop.f32.mrf.mxu0
        %969 = vdwg.mxu0
        %970 = vrot.lane.b32.xlu0 %v625, 120
        %v971 = vpop.permute.xlu0 %970
        %972 = vrot.lane.b32.xlu0 %v710, 120
        %v973 = vpop.permute.xlu0 %972
        %v974 = vsel %vm799, %v971, 0
        %v976 = vsel %vm799, %v973, 0
        %978 = vmatprep.subr.mxu0 0.0
        %979 = vmatpush1.xpose.msra.mxu0 0.0
        %980 = vmatprep.subr.mxu0 0.0
        %981 = vmatpush1.xpose.msra.mxu0 0.0
        %982 = vmatprep.subr.mxu0 0.0
        %983 = vmatpush1.xpose.msra.mxu0 0.0
        %984 = vmatprep.subr.mxu0 0.0
        %985 = vmatpush1.xpose.msra.mxu0 0.0
        %986 = vmatprep.subr.mxu0 0.0
        %987 = vmatpush1.xpose.msra.mxu0 0.0
        %988 = vmatprep.subr.mxu0 0.0
        %989 = vmatpush1.xpose.msra.mxu0 0.0
        %990 = vmatprep.subr.mxu0 0.0
        %991 = vmatpush1.xpose.msra.mxu0 0.0
        %992 = vmatprep.subr.mxu0 0.0
        %993 = vmatpush1.xpose.msra.mxu0 0.0
        %994 = vmatprep.subr.mxu0 0.0
        %995 = vmatpush1.xpose.msra.mxu0 0.0
        %996 = vmatprep.subr.mxu0 0.0
        %997 = vmatpush1.xpose.msra.mxu0 0.0
        %998 = vmatprep.subr.mxu0 0.0
        %999 = vmatpush1.xpose.msra.mxu0 0.0
        %1000 = vmatprep.subr.mxu0 0.0
        %1001 = vmatpush1.xpose.msra.mxu0 0.0
        %1002 = vmatprep.subr.mxu0 0.0
        %1003 = vmatpush1.xpose.msra.mxu0 0.0
        %1004 = vmatprep.subr.mxu0 0.0
        %1005 = vmatpush1.xpose.msra.mxu0 0.0
        %1006 = vmatprep.subr.mxu0 0.0
        %1007 = vmatpush1.xpose.msra.mxu0 0.0
        %1008 = vmatprep.subr.mxu0 0.0
        %1009 = vmatpush1.xpose.msra.mxu0 %v976
        %1010 = vmatprep.subr.mxu0 0.0
        %1011 = vmatpush2.xpose.msra.mxu0 0.0
        %1012 = vmatprep.subr.mxu0 0.0
        %1013 = vmatpush2.xpose.msra.mxu0 0.0
        %1014 = vmatprep.subr.mxu0 0.0
        %1015 = vmatpush2.xpose.msra.mxu0 0.0
        %1016 = vmatprep.subr.mxu0 0.0
        %1017 = vmatpush2.xpose.msra.mxu0 0.0
        %1018 = vmatprep.subr.mxu0 0.0
        %1019 = vmatpush2.xpose.msra.mxu0 0.0
        %1020 = vmatprep.subr.mxu0 0.0
        %1021 = vmatpush2.xpose.msra.mxu0 0.0
        %1022 = vmatprep.subr.mxu0 0.0
        %1023 = vmatpush2.xpose.msra.mxu0 0.0
        %1024 = vmatprep.subr.mxu0 0.0
        %1025 = vmatpush2.xpose.msra.mxu0 0.0
        %1026 = vmatprep.subr.mxu0 0.0
        %1027 = vmatpush2.xpose.msra.mxu0 0.0
        %1028 = vmatprep.subr.mxu0 0.0
        %1029 = vmatpush2.xpose.msra.mxu0 0.0
        %1030 = vmatprep.subr.mxu0 0.0
        %1031 = vmatpush2.xpose.msra.mxu0 0.0
        %1032 = vmatprep.subr.mxu0 0.0
        %1033 = vmatpush2.xpose.msra.mxu0 0.0
        %1034 = vmatprep.subr.mxu0 0.0
        %1035 = vmatpush2.xpose.msra.mxu0 0.0
        %1036 = vmatprep.subr.mxu0 0.0
        %1037 = vmatpush2.xpose.msra.mxu0 0.0
        %1038 = vmatprep.subr.mxu0 0.0
        %1039 = vmatpush2.xpose.msra.mxu0 0.0
        %1040 = vmatprep.subr.mxu0 0.0
        %1041 = vmatpush2.xpose.msra.mxu0 0.0
        %1042 = vmatprep.mubr.f32.mxu0 0.0
        %1043 = vmatmul.mubr.f32.gmra.mxu0 %v974
        %v1044 = vpop.f32.mrf.mxu0
        %v1045 = vadd.f32 0.0, %v1044
        %v1046 = vpop.f32.mrf.mxu0
        %1047 = vdwg.mxu0
        %v1048 = vmul.f32 %v1045, 0.35355338
        %v1049 = vsel %vm883, -1e+09, %v1048
        %v1050 = vsel %vm799, %v1049, -inf
        %1051 = vmax.xlane.f32.xlu0 %v1050
        %v1052 = vpop.xlane.xlu0 %1051
        %v1053 = vsub.f32 %v1049, %v1052
        %v1054 = vmul.f32 %v1053, 1.442695
        %v1055 = vpow.pop %v1054
        %v1056 = vsel %vm799, %v1055, 0.0
        %1057 = vadd.xlane.f32.xlu0 %v1056
        %v1058 = vpop.xlane.xlu0 %1057
        %v1059 = vrcp.pop %v1058
        %v1060 = vmul.f32 %v1055, %v1059
        %s1061 = scalar_lea.vmem %s538, 8 [#allocation14]
        %1062 = vst.msk [vmem:[%s1061] sm:$0xff] %vm799, %v1060
        %1064 = vrot.lane.b32.xlu0 %v795, 120
        %v1065 = vpop.permute.xlu0 %1064
        %v1068 = vsel %vm799, %v1060, 0
        %1070 = vmatprep.subr.mxu0 0.0
        %1071 = vmatpush1.msra.mxu0 0.0
        %1072 = vmatprep.subr.mxu0 0.0
        %1073 = vmatpush1.msra.mxu0 0.0
        %1074 = vmatprep.subr.mxu0 0.0
        %1075 = vmatpush1.msra.mxu0 0.0
        %1076 = vmatprep.subr.mxu0 0.0
        %1077 = vmatpush1.msra.mxu0 0.0
        %1078 = vmatprep.subr.mxu0 0.0
        %1079 = vmatpush1.msra.mxu0 0.0
        %1080 = vmatprep.subr.mxu0 0.0
        %1081 = vmatpush1.msra.mxu0 0.0
        %1082 = vmatprep.subr.mxu0 0.0
        %1083 = vmatpush1.msra.mxu0 0.0
        %1084 = vmatprep.subr.mxu0 0.0
        %1085 = vmatpush1.msra.mxu0 0.0
        %1086 = vmatprep.subr.mxu0 0.0
        %1087 = vmatpush1.msra.mxu0 0.0
        %1088 = vmatprep.subr.mxu0 0.0
        %1089 = vmatpush1.msra.mxu0 0.0
        %1090 = vmatprep.subr.mxu0 0.0
        %1091 = vmatpush1.msra.mxu0 0.0
        %1092 = vmatprep.subr.mxu0 0.0
        %1093 = vmatpush1.msra.mxu0 0.0
        %1094 = vmatprep.subr.mxu0 0.0
        %1095 = vmatpush1.msra.mxu0 0.0
        %1096 = vmatprep.subr.mxu0 0.0
        %1097 = vmatpush1.msra.mxu0 0.0
        %1098 = vmatprep.subr.mxu0 0.0
        %1099 = vmatpush1.msra.mxu0 0.0
        %1100 = vmatprep.subr.mxu0 0.0
        %1101 = vmatpush1.msra.mxu0 %v1065
        %1102 = vmatprep.subr.mxu0 0.0
        %1103 = vmatpush2.msra.mxu0 0.0
        %1104 = vmatprep.subr.mxu0 0.0
        %1105 = vmatpush2.msra.mxu0 0.0
        %1106 = vmatprep.subr.mxu0 0.0
        %1107 = vmatpush2.msra.mxu0 0.0
        %1108 = vmatprep.subr.mxu0 0.0
        %1109 = vmatpush2.msra.mxu0 0.0
        %1110 = vmatprep.subr.mxu0 0.0
        %1111 = vmatpush2.msra.mxu0 0.0
        %1112 = vmatprep.subr.mxu0 0.0
        %1113 = vmatpush2.msra.mxu0 0.0
        %1114 = vmatprep.subr.mxu0 0.0
        %1115 = vmatpush2.msra.mxu0 0.0
        %1116 = vmatprep.subr.mxu0 0.0
        %1117 = vmatpush2.msra.mxu0 0.0
        %1118 = vmatprep.subr.mxu0 0.0
        %1119 = vmatpush2.msra.mxu0 0.0
        %1120 = vmatprep.subr.mxu0 0.0
        %1121 = vmatpush2.msra.mxu0 0.0
        %1122 = vmatprep.subr.mxu0 0.0
        %1123 = vmatpush2.msra.mxu0 0.0
        %1124 = vmatprep.subr.mxu0 0.0
        %1125 = vmatpush2.msra.mxu0 0.0
        %1126 = vmatprep.subr.mxu0 0.0
        %1127 = vmatpush2.msra.mxu0 0.0
        %1128 = vmatprep.subr.mxu0 0.0
        %1129 = vmatpush2.msra.mxu0 0.0
        %1130 = vmatprep.subr.mxu0 0.0
        %1131 = vmatpush2.msra.mxu0 0.0
        %1132 = vmatprep.subr.mxu0 0.0
        %1133 = vmatpush2.msra.mxu0 0.0
        %1134 = vmatprep.mubr.f32.mxu0 0.0
        %1135 = vmatmul.mubr.f32.gmra.mxu0 %v1068
        %v1136 = vpop.f32.mrf.mxu0
        %v1137 = vadd.f32 0.0, %v1136
        %v1138 = vpop.f32.mrf.mxu0
        %1139 = vdwg.mxu0
        %1140 = vrot.lane.b32.xlu0 %v625, 112
        %v1141 = vpop.permute.xlu0 %1140
        %1142 = vrot.lane.b32.xlu0 %v710, 112
        %v1143 = vpop.permute.xlu0 %1142
        %v1144 = vsel %vm799, %v1141, 0
        %v1146 = vsel %vm799, %v1143, 0
        %1148 = vmatprep.subr.mxu0 0.0
        %1149 = vmatpush1.xpose.msra.mxu0 0.0
        %1150 = vmatprep.subr.mxu0 0.0
        %1151 = vmatpush1.xpose.msra.mxu0 0.0
        %1152 = vmatprep.subr.mxu0 0.0
        %1153 = vmatpush1.xpose.msra.mxu0 0.0
        %1154 = vmatprep.subr.mxu0 0.0
        %1155 = vmatpush1.xpose.msra.mxu0 0.0
        %1156 = vmatprep.subr.mxu0 0.0
        %1157 = vmatpush1.xpose.msra.mxu0 0.0
        %1158 = vmatprep.subr.mxu0 0.0
        %1159 = vmatpush1.xpose.msra.mxu0 0.0
        %1160 = vmatprep.subr.mxu0 0.0
        %1161 = vmatpush1.xpose.msra.mxu0 0.0
        %1162 = vmatprep.subr.mxu0 0.0
        %1163 = vmatpush1.xpose.msra.mxu0 0.0
        %1164 = vmatprep.subr.mxu0 0.0
        %1165 = vmatpush1.xpose.msra.mxu0 0.0
        %1166 = vmatprep.subr.mxu0 0.0
        %1167 = vmatpush1.xpose.msra.mxu0 0.0
        %1168 = vmatprep.subr.mxu0 0.0
        %1169 = vmatpush1.xpose.msra.mxu0 0.0
        %1170 = vmatprep.subr.mxu0 0.0
        %1171 = vmatpush1.xpose.msra.mxu0 0.0
        %1172 = vmatprep.subr.mxu0 0.0
        %1173 = vmatpush1.xpose.msra.mxu0 0.0
        %1174 = vmatprep.subr.mxu0 0.0
        %1175 = vmatpush1.xpose.msra.mxu0 0.0
        %1176 = vmatprep.subr.mxu0 0.0
        %1177 = vmatpush1.xpose.msra.mxu0 0.0
        %1178 = vmatprep.subr.mxu0 0.0
        %1179 = vmatpush1.xpose.msra.mxu0 %v1146
        %1180 = vmatprep.subr.mxu0 0.0
        %1181 = vmatpush2.xpose.msra.mxu0 0.0
        %1182 = vmatprep.subr.mxu0 0.0
        %1183 = vmatpush2.xpose.msra.mxu0 0.0
        %1184 = vmatprep.subr.mxu0 0.0
        %1185 = vmatpush2.xpose.msra.mxu0 0.0
        %1186 = vmatprep.subr.mxu0 0.0
        %1187 = vmatpush2.xpose.msra.mxu0 0.0
        %1188 = vmatprep.subr.mxu0 0.0
        %1189 = vmatpush2.xpose.msra.mxu0 0.0
        %1190 = vmatprep.subr.mxu0 0.0
        %1191 = vmatpush2.xpose.msra.mxu0 0.0
        %1192 = vmatprep.subr.mxu0 0.0
        %1193 = vmatpush2.xpose.msra.mxu0 0.0
        %1194 = vmatprep.subr.mxu0 0.0
        %1195 = vmatpush2.xpose.msra.mxu0 0.0
        %1196 = vmatprep.subr.mxu0 0.0
        %1197 = vmatpush2.xpose.msra.mxu0 0.0
        %1198 = vmatprep.subr.mxu0 0.0
        %1199 = vmatpush2.xpose.msra.mxu0 0.0
        %1200 = vmatprep.subr.mxu0 0.0
        %1201 = vmatpush2.xpose.msra.mxu0 0.0
        %1202 = vmatprep.subr.mxu0 0.0
        %1203 = vmatpush2.xpose.msra.mxu0 0.0
        %1204 = vmatprep.subr.mxu0 0.0
        %1205 = vmatpush2.xpose.msra.mxu0 0.0
        %1206 = vmatprep.subr.mxu0 0.0
        %1207 = vmatpush2.xpose.msra.mxu0 0.0
        %1208 = vmatprep.subr.mxu0 0.0
        %1209 = vmatpush2.xpose.msra.mxu0 0.0
        %1210 = vmatprep.subr.mxu0 0.0
        %1211 = vmatpush2.xpose.msra.mxu0 0.0
        %1212 = vmatprep.mubr.f32.mxu0 0.0
        %1213 = vmatmul.mubr.f32.gmra.mxu0 %v1144
        %v1214 = vpop.f32.mrf.mxu0
        %v1215 = vadd.f32 0.0, %v1214
        %v1216 = vpop.f32.mrf.mxu0
        %1217 = vdwg.mxu0
        %v1218 = vmul.f32 %v1215, 0.35355338
        %v1219 = vsel %vm883, -1e+09, %v1218
        %v1220 = vsel %vm799, %v1219, -inf
        %1221 = vmax.xlane.f32.xlu0 %v1220
        %v1222 = vpop.xlane.xlu0 %1221
        %v1223 = vsub.f32 %v1219, %v1222
        %v1224 = vmul.f32 %v1223, 1.442695
        %v1225 = vpow.pop %v1224
        %v1226 = vsel %vm799, %v1225, 0.0
        %1227 = vadd.xlane.f32.xlu0 %v1226
        %v1228 = vpop.xlane.xlu0 %1227
        %v1229 = vrcp.pop %v1228
        %v1230 = vmul.f32 %v1225, %v1229
        %s1231 = scalar_lea.vmem %s538, 16 [#allocation14]
        %1232 = vst.msk [vmem:[%s1231] sm:$0xff] %vm799, %v1230
        %1233 = vrot.lane.b32.xlu0 %v795, 112
        %v1234 = vpop.permute.xlu0 %1233
        %v1237 = vsel %vm799, %v1230, 0
        %1239 = vmatprep.subr.mxu0 0.0
        %1240 = vmatpush1.msra.mxu0 0.0
        %1241 = vmatprep.subr.mxu0 0.0
        %1242 = vmatpush1.msra.mxu0 0.0
        %1243 = vmatprep.subr.mxu0 0.0
        %1244 = vmatpush1.msra.mxu0 0.0
        %1245 = vmatprep.subr.mxu0 0.0
        %1246 = vmatpush1.msra.mxu0 0.0
        %1247 = vmatprep.subr.mxu0 0.0
        %1248 = vmatpush1.msra.mxu0 0.0
        %1249 = vmatprep.subr.mxu0 0.0
        %1250 = vmatpush1.msra.mxu0 0.0
        %1251 = vmatprep.subr.mxu0 0.0
        %1252 = vmatpush1.msra.mxu0 0.0
        %1253 = vmatprep.subr.mxu0 0.0
        %1254 = vmatpush1.msra.mxu0 0.0
        %1255 = vmatprep.subr.mxu0 0.0
        %1256 = vmatpush1.msra.mxu0 0.0
        %1257 = vmatprep.subr.mxu0 0.0
        %1258 = vmatpush1.msra.mxu0 0.0
        %1259 = vmatprep.subr.mxu0 0.0
        %1260 = vmatpush1.msra.mxu0 0.0
        %1261 = vmatprep.subr.mxu0 0.0
        %1262 = vmatpush1.msra.mxu0 0.0
        %1263 = vmatprep.subr.mxu0 0.0
        %1264 = vmatpush1.msra.mxu0 0.0
        %1265 = vmatprep.subr.mxu0 0.0
        %1266 = vmatpush1.msra.mxu0 0.0
        %1267 = vmatprep.subr.mxu0 0.0
        %1268 = vmatpush1.msra.mxu0 0.0
        %1269 = vmatprep.subr.mxu0 0.0
        %1270 = vmatpush1.msra.mxu0 %v1234
        %1271 = vmatprep.subr.mxu0 0.0
        %1272 = vmatpush2.msra.mxu0 0.0
        %1273 = vmatprep.subr.mxu0 0.0
        %1274 = vmatpush2.msra.mxu0 0.0
        %1275 = vmatprep.subr.mxu0 0.0
        %1276 = vmatpush2.msra.mxu0 0.0
        %1277 = vmatprep.subr.mxu0 0.0
        %1278 = vmatpush2.msra.mxu0 0.0
        %1279 = vmatprep.subr.mxu0 0.0
        %1280 = vmatpush2.msra.mxu0 0.0
        %1281 = vmatprep.subr.mxu0 0.0
        %1282 = vmatpush2.msra.mxu0 0.0
        %1283 = vmatprep.subr.mxu0 0.0
        %1284 = vmatpush2.msra.mxu0 0.0
        %1285 = vmatprep.subr.mxu0 0.0
        %1286 = vmatpush2.msra.mxu0 0.0
        %1287 = vmatprep.subr.mxu0 0.0
        %1288 = vmatpush2.msra.mxu0 0.0
        %1289 = vmatprep.subr.mxu0 0.0
        %1290 = vmatpush2.msra.mxu0 0.0
        %1291 = vmatprep.subr.mxu0 0.0
        %1292 = vmatpush2.msra.mxu0 0.0
        %1293 = vmatprep.subr.mxu0 0.0
        %1294 = vmatpush2.msra.mxu0 0.0
        %1295 = vmatprep.subr.mxu0 0.0
        %1296 = vmatpush2.msra.mxu0 0.0
        %1297 = vmatprep.subr.mxu0 0.0
        %1298 = vmatpush2.msra.mxu0 0.0
        %1299 = vmatprep.subr.mxu0 0.0
        %1300 = vmatpush2.msra.mxu0 0.0
        %1301 = vmatprep.subr.mxu0 0.0
        %1302 = vmatpush2.msra.mxu0 0.0
        %1303 = vmatprep.mubr.f32.mxu0 0.0
        %1304 = vmatmul.mubr.f32.gmra.mxu0 %v1237
        %v1305 = vpop.f32.mrf.mxu0
        %v1306 = vadd.f32 0.0, %v1305
        %v1307 = vpop.f32.mrf.mxu0
        %1308 = vdwg.mxu0
        %1309 = vrot.lane.b32.xlu0 %v625, 104
        %v1310 = vpop.permute.xlu0 %1309
        %1311 = vrot.lane.b32.xlu0 %v710, 104
        %v1312 = vpop.permute.xlu0 %1311
        %v1313 = vsel %vm799, %v1310, 0
        %v1315 = vsel %vm799, %v1312, 0
        %1317 = vmatprep.subr.mxu0 0.0
        %1318 = vmatpush1.xpose.msra.mxu0 0.0
        %1319 = vmatprep.subr.mxu0 0.0
        %1320 = vmatpush1.xpose.msra.mxu0 0.0
        %1321 = vmatprep.subr.mxu0 0.0
        %1322 = vmatpush1.xpose.msra.mxu0 0.0
        %1323 = vmatprep.subr.mxu0 0.0
        %1324 = vmatpush1.xpose.msra.mxu0 0.0
        %1325 = vmatprep.subr.mxu0 0.0
        %1326 = vmatpush1.xpose.msra.mxu0 0.0
        %1327 = vmatprep.subr.mxu0 0.0
        %1328 = vmatpush1.xpose.msra.mxu0 0.0
        %1329 = vmatprep.subr.mxu0 0.0
        %1330 = vmatpush1.xpose.msra.mxu0 0.0
        %1331 = vmatprep.subr.mxu0 0.0
        %1332 = vmatpush1.xpose.msra.mxu0 0.0
        %1333 = vmatprep.subr.mxu0 0.0
        %1334 = vmatpush1.xpose.msra.mxu0 0.0
        %1335 = vmatprep.subr.mxu0 0.0
        %1336 = vmatpush1.xpose.msra.mxu0 0.0
        %1337 = vmatprep.subr.mxu0 0.0
        %1338 = vmatpush1.xpose.msra.mxu0 0.0
        %1339 = vmatprep.subr.mxu0 0.0
        %1340 = vmatpush1.xpose.msra.mxu0 0.0
        %1341 = vmatprep.subr.mxu0 0.0
        %1342 = vmatpush1.xpose.msra.mxu0 0.0
        %1343 = vmatprep.subr.mxu0 0.0
        %1344 = vmatpush1.xpose.msra.mxu0 0.0
        %1345 = vmatprep.subr.mxu0 0.0
        %1346 = vmatpush1.xpose.msra.mxu0 0.0
        %1347 = vmatprep.subr.mxu0 0.0
        %1348 = vmatpush1.xpose.msra.mxu0 %v1315
        %1349 = vmatprep.subr.mxu0 0.0
        %1350 = vmatpush2.xpose.msra.mxu0 0.0
        %1351 = vmatprep.subr.mxu0 0.0
        %1352 = vmatpush2.xpose.msra.mxu0 0.0
        %1353 = vmatprep.subr.mxu0 0.0
        %1354 = vmatpush2.xpose.msra.mxu0 0.0
        %1355 = vmatprep.subr.mxu0 0.0
        %1356 = vmatpush2.xpose.msra.mxu0 0.0
        %1357 = vmatprep.subr.mxu0 0.0
        %1358 = vmatpush2.xpose.msra.mxu0 0.0
        %1359 = vmatprep.subr.mxu0 0.0
        %1360 = vmatpush2.xpose.msra.mxu0 0.0
        %1361 = vmatprep.subr.mxu0 0.0
        %1362 = vmatpush2.xpose.msra.mxu0 0.0
        %1363 = vmatprep.subr.mxu0 0.0
        %1364 = vmatpush2.xpose.msra.mxu0 0.0
        %1365 = vmatprep.subr.mxu0 0.0
        %1366 = vmatpush2.xpose.msra.mxu0 0.0
        %1367 = vmatprep.subr.mxu0 0.0
        %1368 = vmatpush2.xpose.msra.mxu0 0.0
        %1369 = vmatprep.subr.mxu0 0.0
        %1370 = vmatpush2.xpose.msra.mxu0 0.0
        %1371 = vmatprep.subr.mxu0 0.0
        %1372 = vmatpush2.xpose.msra.mxu0 0.0
        %1373 = vmatprep.subr.mxu0 0.0
        %1374 = vmatpush2.xpose.msra.mxu0 0.0
        %1375 = vmatprep.subr.mxu0 0.0
        %1376 = vmatpush2.xpose.msra.mxu0 0.0
        %1377 = vmatprep.subr.mxu0 0.0
        %1378 = vmatpush2.xpose.msra.mxu0 0.0
        %1379 = vmatprep.subr.mxu0 0.0
        %1380 = vmatpush2.xpose.msra.mxu0 0.0
        %1381 = vmatprep.mubr.f32.mxu0 0.0
        %1382 = vmatmul.mubr.f32.gmra.mxu0 %v1313
        %v1383 = vpop.f32.mrf.mxu0
        %v1384 = vadd.f32 0.0, %v1383
        %v1385 = vpop.f32.mrf.mxu0
        %1386 = vdwg.mxu0
        %v1387 = vmul.f32 %v1384, 0.35355338
        %v1388 = vsel %vm883, -1e+09, %v1387
        %v1389 = vsel %vm799, %v1388, -inf
        %1390 = vmax.xlane.f32.xlu0 %v1389
        %v1391 = vpop.xlane.xlu0 %1390
        %v1392 = vsub.f32 %v1388, %v1391
        %v1393 = vmul.f32 %v1392, 1.442695
        %v1394 = vpow.pop %v1393
        %v1395 = vsel %vm799, %v1394, 0.0
        %1396 = vadd.xlane.f32.xlu0 %v1395
        %v1397 = vpop.xlane.xlu0 %1396
        %v1398 = vrcp.pop %v1397
        %v1399 = vmul.f32 %v1394, %v1398
        %s1400 = scalar_lea.vmem %s538, 24 [#allocation14]
        %1401 = vst.msk [vmem:[%s1400] sm:$0xff] %vm799, %v1399
        %1402 = vrot.lane.b32.xlu0 %v795, 104
        %v1403 = vpop.permute.xlu0 %1402
        %v1406 = vsel %vm799, %v1399, 0
        %1408 = vmatprep.subr.mxu0 0.0
        %1409 = vmatpush1.msra.mxu0 0.0
        %1410 = vmatprep.subr.mxu0 0.0
        %1411 = vmatpush1.msra.mxu0 0.0
        %1412 = vmatprep.subr.mxu0 0.0
        %1413 = vmatpush1.msra.mxu0 0.0
        %1414 = vmatprep.subr.mxu0 0.0
        %1415 = vmatpush1.msra.mxu0 0.0
        %1416 = vmatprep.subr.mxu0 0.0
        %1417 = vmatpush1.msra.mxu0 0.0
        %1418 = vmatprep.subr.mxu0 0.0
        %1419 = vmatpush1.msra.mxu0 0.0
        %1420 = vmatprep.subr.mxu0 0.0
        %1421 = vmatpush1.msra.mxu0 0.0
        %1422 = vmatprep.subr.mxu0 0.0
        %1423 = vmatpush1.msra.mxu0 0.0
        %1424 = vmatprep.subr.mxu0 0.0
        %1425 = vmatpush1.msra.mxu0 0.0
        %1426 = vmatprep.subr.mxu0 0.0
        %1427 = vmatpush1.msra.mxu0 0.0
        %1428 = vmatprep.subr.mxu0 0.0
        %1429 = vmatpush1.msra.mxu0 0.0
        %1430 = vmatprep.subr.mxu0 0.0
        %1431 = vmatpush1.msra.mxu0 0.0
        %1432 = vmatprep.subr.mxu0 0.0
        %1433 = vmatpush1.msra.mxu0 0.0
        %1434 = vmatprep.subr.mxu0 0.0
        %1435 = vmatpush1.msra.mxu0 0.0
        %1436 = vmatprep.subr.mxu0 0.0
        %1437 = vmatpush1.msra.mxu0 0.0
        %1438 = vmatprep.subr.mxu0 0.0
        %1439 = vmatpush1.msra.mxu0 %v1403
        %1440 = vmatprep.subr.mxu0 0.0
        %1441 = vmatpush2.msra.mxu0 0.0
        %1442 = vmatprep.subr.mxu0 0.0
        %1443 = vmatpush2.msra.mxu0 0.0
        %1444 = vmatprep.subr.mxu0 0.0
        %1445 = vmatpush2.msra.mxu0 0.0
        %1446 = vmatprep.subr.mxu0 0.0
        %1447 = vmatpush2.msra.mxu0 0.0
        %1448 = vmatprep.subr.mxu0 0.0
        %1449 = vmatpush2.msra.mxu0 0.0
        %1450 = vmatprep.subr.mxu0 0.0
        %1451 = vmatpush2.msra.mxu0 0.0
        %1452 = vmatprep.subr.mxu0 0.0
        %1453 = vmatpush2.msra.mxu0 0.0
        %1454 = vmatprep.subr.mxu0 0.0
        %1455 = vmatpush2.msra.mxu0 0.0
        %1456 = vmatprep.subr.mxu0 0.0
        %1457 = vmatpush2.msra.mxu0 0.0
        %1458 = vmatprep.subr.mxu0 0.0
        %1459 = vmatpush2.msra.mxu0 0.0
        %1460 = vmatprep.subr.mxu0 0.0
        %1461 = vmatpush2.msra.mxu0 0.0
        %1462 = vmatprep.subr.mxu0 0.0
        %1463 = vmatpush2.msra.mxu0 0.0
        %1464 = vmatprep.subr.mxu0 0.0
        %1465 = vmatpush2.msra.mxu0 0.0
        %1466 = vmatprep.subr.mxu0 0.0
        %1467 = vmatpush2.msra.mxu0 0.0
        %1468 = vmatprep.subr.mxu0 0.0
        %1469 = vmatpush2.msra.mxu0 0.0
        %1470 = vmatprep.subr.mxu0 0.0
        %1471 = vmatpush2.msra.mxu0 0.0
        %1472 = vmatprep.mubr.f32.mxu0 0.0
        %1473 = vmatmul.mubr.f32.gmra.mxu0 %v1406
        %v1474 = vpop.f32.mrf.mxu0
        %v1475 = vadd.f32 0.0, %v1474
        %v1476 = vpop.f32.mrf.mxu0
        %1477 = vdwg.mxu0
        %1479 = vrot.lane.b32.xlu0 %v1137, 8
        %v1480 = vpop.permute.xlu0 %1479
        %1483 = vrot.lane.b32.xlu0 %v1306, 16
        %v1484 = vpop.permute.xlu0 %1483
        %1487 = vrot.lane.b32.xlu0 %v1475, 24
        %v1488 = vpop.permute.xlu0 %1487
        %v1490 = vsel %vm799, %v967, %v1480
        %vm1491 = vcmask 130048
        %v1492 = vsel %vm1491, %v1490, %v1484
        %vm1493 = vcmask 195584
        %v1494 = vsel %vm1493, %v1492, %v1488
        %1495 = vst.msk [vmem:[%s531] sm:$0xff] %vm554, %v1494
        %s1496 = sand.u32 %s275, 1
        %s1497 = scalar_lea.sflag [#allocation4], %s1496
        %s1498 = sand.u32 %s275, 1
        %s1499 = smul.addr %s1498, 8
        %s1500 = scalar_lea.vmem [#allocation13], %s1499
        %s1501 = sand.u32 %s301, 1
        %s1502 = scalar_lea.sflag [#allocation15], %s1501
        %s1503 = sand.u32 %s301, 1
        %s1504 = smul.addr %s1503, 32
        %s1505 = scalar_lea.vmem [#allocation14], %s1504
        // Predicated region
        $region85: #{tpu_custom_call.1} parent=59 // pred_check
          %p1506 = pneg %p285
        $region86: #{tpu_custom_call.1} parent=59 // pred_check_branch
          %1508 = sbr.rel (%p1506) target = $region88
        $region87: #{tpu_custom_call.1} parent=59 // pred_region
          %s1510 = ssub.s32 128, 128
          %1511 = vsyncadd %s1497, %s1510
          %s1512 = smul.addr %s37, 128
          %s1513 = scalar_lea.hbm %s10, %s1512
          %s1515 = sshll.u32 %s1500, 4
          %s1516 = int_to_ptr.vmem [resolvable:$true] %s1515
          %1518 = dma.vmem_to_hbm [thread:$0]  %s1516, 128, %s1513, %s1497
        $region88: #{tpu_custom_call.1} parent=59 // pred_fallthru
          _
        // Predicated region
        $region89: #{tpu_custom_call.1} parent=59 // pred_check
          %p1519 = pneg %p311
        $region90: #{tpu_custom_call.1} parent=59 // pred_check_branch
          %1521 = sbr.rel (%p1519) target = $region92
        $region91: #{tpu_custom_call.1} parent=59 // pred_region
          %s1523 = ssub.s32 512, 512
          %1524 = vsyncadd %s1502, %s1523
          %s1525 = smul.addr %s37, 128
          %s1526 = scalar_lea.hbm %s11, %s1525
          %s1527 = sshll.u32 %s1505, 4
          %s1528 = int_to_ptr.vmem [resolvable:$true] %s1527
          %1533 = dma.vmem_to_hbm [thread:$0]  %s1528, 512, %s1526, %s1502, 128, 256, 8
        $region92: #{tpu_custom_call.1} parent=59 // pred_fallthru
          _
      $region60: #{tpu_custom_call.1} parent=5 // pred_fallthru
        _
      %p1534 = scmp.le.s32.totalorder 2, %s32
      // Predicated region
      $region93: #{tpu_custom_call.1} parent=5 // pred_check
        %p1535 = pneg %p1534
      $region94: #{tpu_custom_call.1} parent=5 // pred_check_branch
        %1537 = sbr.rel (%p1535) target = $region96
      $region95: #{tpu_custom_call.1} parent=5 // pred_region
        %s1538 = ssub.s32 %s32, 2
        // Predicated region
        $region97: #{tpu_custom_call.1} parent=95 // pred_check
          %p1539 = pneg %p291
        $region98: #{tpu_custom_call.1} parent=95 // pred_check_branch
          %1541 = sbr.rel (%p1539) target = $region100
        $region99: #{tpu_custom_call.1} parent=95 // pred_region
          %s1542 = sand.u32 %s276, 1
          %s1543 = scalar_lea.sflag [#allocation4], %s1542
          %s1544 = sand.u32 %s276, 1
          %s1545 = smul.addr %s1544, 8
          %s1546 = scalar_lea.vmem [#allocation13], %s1545
          %1547 = dma.done %s1543, 128
        $region100: #{tpu_custom_call.1} parent=95 // pred_fallthru
          _
        // Predicated region
        $region101: #{tpu_custom_call.1} parent=95 // pred_check
          %p1548 = pneg %p317
        $region102: #{tpu_custom_call.1} parent=95 // pred_check_branch
          %1550 = sbr.rel (%p1548) target = $region104
        $region103: #{tpu_custom_call.1} parent=95 // pred_region
          %s1551 = sand.u32 %s302, 1
          %s1552 = scalar_lea.sflag [#allocation15], %s1551
          %s1553 = sand.u32 %s302, 1
          %s1554 = smul.addr %s1553, 32
          %s1555 = scalar_lea.vmem [#allocation14], %s1554
          %1556 = dma.done %s1552, 512
        $region104: #{tpu_custom_call.1} parent=95 // pred_fallthru
          _
      $region96: #{tpu_custom_call.1} parent=5 // pred_fallthru
        _
    $region6: #{tpu_custom_call.1} parent=1 // loop_footer
      %s36 = sadd.s32 1, %s32
    $region7: #{tpu_custom_call.1} parent=1 // loop_footer_branch
      %31 = sbr.rel target = $region3
    $region8: #{tpu_custom_call.1} parent=1 // loop_exit
      _
    %1557 = vsyncpa [#allocation3], 1
    %s1558 = scalar_lea.sflag [#allocation3], 1
    %1559 = vsyncpa %s1558, 1
    %1560 = vsyncpa [#allocation6], 1
    %s1561 = scalar_lea.sflag [#allocation6], 1
    %1562 = vsyncpa %s1561, 1
    %1563 = vsyncpa [#allocation9], 1
    %1564 = vsyncpa [#allocation12], 1
    %1565 = vsyncpa [#allocation4], 1
    %s1566 = scalar_lea.sflag [#allocation4], 1
    %1567 = vsyncpa %s1566, 1
    %1568 = vsyncpa [#allocation15], 1
    %s1569 = scalar_lea.sflag [#allocation15], 1
    %1570 = vsyncpa %s1569, 1

</llo_original>
